<compile_context>
chip_gen: v7x
topology: tpu7x:2x2x1
jax: 0.10.0
libtpu: 0.0.40
codegen_flags: <defaults>
</compile_context>

<pallas_src>
import numpy as np

import jax
import jax.numpy as jnp
from jax.experimental import pallas as pl
from jax.experimental.pallas import tpu as pltpu

_EPS = 1e-5


# ----------------------------------------------------------------------------
# Host-side constant construction (done ONCE at parameter-init time).
# ----------------------------------------------------------------------------
def fold_bn(gamma, beta, running_mean, running_var, eps=_EPS):
    scale = gamma / jnp.sqrt(running_var + eps)
    bias = beta - running_mean * scale
    return scale, bias


def _build_conv1_pair_mat(w_oihw, scale, size, dtype=jnp.bfloat16):
    """3x3 / stride-1 / pad-1 conv (+ folded BN scale) in row-pair layout.

    lhs row p = [pair p-1 | pair p | pair p+1]  (6 blocks of W*C_in = 384 lanes)
    out row p = [conv row 2p | conv row 2p+1]   (2 halves of W*C_out = 256 lanes)
    """
    co, ci, kh_sz, kw_sz = w_oihw.shape
    w = (np.asarray(w_oihw, np.float32)
         * np.asarray(scale, np.float32)[:, None, None, None])
    blk_in, blk_out = size * ci, size * co
    a = np.zeros((6 * blk_in, 2 * blk_out), np.float32)
    for h in range(2):                      # output row 2p + h
        for kh in range(kh_sz):
            q = h + kh + 1                  # input-row block (row 2p - 2 + q)
            for j in range(size):           # output width
                for kw in range(kw_sz):
                    wi = j + kw - 1
                    if 0 <= wi < size:
                        a[q * blk_in + wi * ci: q * blk_in + (wi + 1) * ci,
                          h * blk_out + j * co: h * blk_out + (j + 1) * co] += \
                            w[:, :, kh, kw].T
    return jnp.asarray(a, dtype)


def _build_conv2_pair_mat(w_oihw, scale, size_in, dtype=jnp.bfloat16):
    """3x3 / stride-2 / pad-1 conv (+ folded BN scale) reading row-pair input.

    lhs row i2 = [y1 pair i2-1 | y1 pair i2]   (4 blocks of W*C1 = 512 lanes)
    out row i2 = conv output row i2            (W_out*C2 = 256 lanes)
    """
    co, ci, kh_sz, kw_sz = w_oihw.shape
    size_out = (size_in + 2 - kh_sz) // 2 + 1
    w = (np.asarray(w_oihw, np.float32)
         * np.asarray(scale, np.float32)[:, None, None, None])
    blk_in = size_in * ci
    a = np.zeros((4 * blk_in, size_out * co), np.float32)
    for kh in range(kh_sz):
        q = kh + 1                          # y1 row 2*i2 - 2 + q
        for j in range(size_out):
            for kw in range(kw_sz):
                wi = 2 * j + kw - 1
                if 0 <= wi < size_in:
                    a[q * blk_in + wi * ci: q * blk_in + (wi + 1) * ci,
                      j * co:(j + 1) * co] += w[:, :, kh, kw].T
    return jnp.asarray(a, dtype), size_out


def init_params(key):
    c_in, c1, c2 = 4, 8, 32
    ks = jax.random.split(key, 8)
    p = {}
    p["w1_oihw"] = jax.random.normal(ks[0], (c1, c_in, 3, 3), jnp.float32) * 0.1
    p["s1"], p["b1"] = fold_bn(
        1.0 + 0.05 * jax.random.normal(ks[1], (c1,), jnp.float32),
        0.05 * jax.random.normal(ks[2], (c1,), jnp.float32),
        0.05 * jax.random.normal(ks[3], (c1,), jnp.float32),
        jnp.abs(jax.random.normal(ks[4], (c1,), jnp.float32)) + 0.5,
    )
    p["w2_oihw"] = jax.random.normal(ks[5], (c2, c1, 3, 3), jnp.float32) * 0.1
    p["s2"], p["b2"] = fold_bn(
        1.0 + 0.05 * jax.random.normal(ks[6], (c2,), jnp.float32),
        0.05 * jax.random.normal(ks[7], (c2,), jnp.float32),
        jnp.zeros((c2,), jnp.float32),
        jnp.ones((c2,), jnp.float32),
    )
    return p


def prepare_kernel_constants(params, size=16):
    """Build the structured matmul operands for the fused kernel (host, once).

    NOTE: at real facenet crop sizes (e.g. 160) these constants grow into the
    tens of MiB; they should then be single-buffered (pipeline_mode=
    pl.Buffered(1), their index_map is constant) and vmem_limit_bytes set,
    especially on v7x (64 MiB VMEM).  At size=16 this is a non-issue.
    """
    assert size % 2 == 0, "even square spatial size assumed"
    c2 = params["w2_oihw"].shape[0]
    kc = {}
    kc["w1"] = _build_conv1_pair_mat(params["w1_oihw"], params["s1"], size)
    kc["b1"] = jnp.tile(params["b1"], (2 * size,)).reshape(1, -1).astype(jnp.float32)
    kc["w2"], s2_out = _build_conv2_pair_mat(params["w2_oihw"], params["s2"], size)
    kc["b2"] = jnp.tile(params["b2"], (s2_out,)).reshape(1, -1).astype(jnp.float32)
    # Global-average-pool projection: (W_out*C2, C2), scaled by 1/(H_out*W_out).
    kc["pool"] = jnp.asarray(
        np.tile(np.eye(c2, dtype=np.float32), (s2_out, 1)) / float(s2_out * s2_out))
    return kc


# ----------------------------------------------------------------------------
# Fused Pallas kernel: whole forward for Bt images per grid step.
# ----------------------------------------------------------------------------
def _facenet_fused_kernel(x_ref, w1_ref, b1_ref, w2_ref, b2_ref, pool_ref, o_ref):
    f32, bf16 = jnp.float32, jnp.bfloat16
    bt, pairs, lx = x_ref.shape                          # (Bt, H/2, 2*W*C_in)
    m = bt * pairs                                       # batch stacked on M

    x = x_ref[...].reshape(m, lx)                        # (Bt*8, 128) f32
    p_loc = jax.lax.broadcasted_iota(jnp.int32, (m, 1), 0) % pairs

    # ---- Conv1 (3x3, s1, p1) + folded BN + ReLU: ONE MXU matmul -------------
    # Vertical 'same' padding / image boundaries handled by sublane rolls +
    # per-image zero masks (XLU/VPU, off the MXU path).
    x_prev = jnp.where(p_loc == 0, 0.0, pltpu.roll(x, 1, 0)).astype(bf16)
    x_next = jnp.where(p_loc == pairs - 1, 0.0, pltpu.roll(x, m - 1, 0)).astype(bf16)
    lhs1 = jnp.concatenate([x_prev, x.astype(bf16), x_next], axis=1)   # (m, 384)
    y1 = jnp.maximum(
        jnp.dot(lhs1, w1_ref[...], preferred_element_type=f32) + b1_ref[...],
        0.0)                                             # (m, 256) f32, row-pairs

    # ---- Conv2 (3x3, s2, p1) + folded BN + ReLU: ONE MXU matmul -------------
    # Stride-2 row selection is already folded into the pair layout: one
    # output row per pair; only the previous pair (rows 2i-2, 2i-1) is needed.
    y1_prev = jnp.where(p_loc == 0, 0.0, pltpu.roll(y1, 1, 0)).astype(bf16)
    lhs2 = jnp.concatenate([y1_prev, y1.astype(bf16)], axis=1)         # (m, 512)
    y2 = jnp.maximum(
        jnp.dot(lhs2, w2_ref[...], preferred_element_type=f32) + b2_ref[...],
        0.0)                                             # (m, 256) f32

    # ---- AdaptiveAvgPool2d(1) + Flatten (the Linear head was removed) -------
    row_sum = jnp.sum(y2.reshape(bt, pairs, y2.shape[-1]), axis=1)     # (Bt, 256)
    o_ref[0] = jnp.dot(row_sum, pool_ref[...],
                       preferred_element_type=f32).astype(o_ref.dtype)  # (Bt, 32)


def _fused_forward_call(x_pairs, kc, bt):
    bp, pairs, lx = x_pairs.shape                        # bp divisible by bt
    n_blocks = bp // bt
    out_c = kc["pool"].shape[1]

    m_rows = bp * pairs
    flops = 2 * (m_rows * kc["w1"].shape[0] * kc["w1"].shape[1]
                 + m_rows * kc["w2"].shape[0] * kc["w2"].shape[1]
                 + bp * kc["pool"].shape[0] * kc["pool"].shape[1])
    bytes_accessed = int(
        x_pairs.size * x_pairs.dtype.itemsize
        + sum(int(kc[k].size) * kc[k].dtype.itemsize
              for k in ("w1", "b1", "w2", "b2", "pool"))
        + bp * out_c * 4)

    out = pl.pallas_call(
        _facenet_fused_kernel,
        out_shape=jax.ShapeDtypeStruct((n_blocks, bt, out_c), jnp.float32),
        grid_spec=pltpu.PrefetchScalarGridSpec(
            num_scalar_prefetch=0,
            grid=(n_blocks,),
            in_specs=[
                pl.BlockSpec((bt, pairs, lx), lambda i: (i, 0, 0)),
                pl.BlockSpec(kc["w1"].shape, lambda i: (0, 0)),
                pl.BlockSpec(kc["b1"].shape, lambda i: (0, 0)),
                pl.BlockSpec(kc["w2"].shape, lambda i: (0, 0)),
                pl.BlockSpec(kc["b2"].shape, lambda i: (0, 0)),
                pl.BlockSpec(kc["pool"].shape, lambda i: (0, 0)),
            ],
            out_specs=pl.BlockSpec((1, bt, out_c), lambda i: (i, 0, 0)),
        ),
        compiler_params=pltpu.CompilerParams(
            dimension_semantics=("parallel",),
            # Let XLA fuse the NCHW->row-pair transpose/cast/pad producer into
            # the image operand (no separate HBM round trip for layout prep).
            allow_input_fusion=[True, False, False, False, False, False],
        ),
        cost_estimate=pl.CostEstimate(
            flops=int(flops), transcendentals=0, bytes_accessed=bytes_accessed),
    )(x_pairs, kc["w1"], kc["b1"], kc["w2"], kc["b2"], kc["pool"])
    return out.reshape(bp, out_c)


@jax.jit
def facenet_forward(x_nchw, kernel_consts):
    """Forward of clsTFBaseModel with the Linear head removed (num_removed_layers=1)."""
    b, c, h, w = x_nchw.shape
    # Row-pair layout (B, H/2, 2*W*C): channels minor on lanes; the pair
    # packing is a free row-major reshape and is what lets the kernel fold the
    # stride-2 vertical subsampling of conv2 into its weight matrix.
    x_pairs = jnp.transpose(x_nchw, (0, 2, 3, 1)).reshape(
        b, h // 2, 2 * w * c).astype(jnp.float32)
    # Sub-batch per grid step: amortize per-step overhead / output DMA and
    # stack the batch along M, while keeping >= 2 "parallel" grid steps so
    # v7x's two TensorCores both get work (cap Bt=8 to bound vreg pressure).
    bt = max(1, min(8, -(-b // 2)))
    bp = -(-b // bt) * bt
    if bp != b:
        x_pairs = jnp.pad(x_pairs, ((0, bp - b), (0, 0), (0, 0)))
    out = _fused_forward_call(x_pairs, kernel_consts, bt)
    return out[:b]


# ----------------------------------------------------------------------------
# Pure-JAX reference (lax.conv, f32) to validate the Pallas path.
# ----------------------------------------------------------------------------
def reference_forward(x_nchw, params):
    x = x_nchw.astype(jnp.float32)
    dn = ("NCHW", "OIHW", "NCHW")

    def block(x, w_oihw, s, b, stride):
        y = jax.lax.conv_general_dilated(
            x, w_oihw, window_strides=(stride, stride),
            padding=((1, 1), (1, 1)), dimension_numbers=dn)
        y = y * s.reshape(1, -1, 1, 1) + b.reshape(1, -1, 1, 1)
        return jnp.maximum(y, 0.0)

    y = block(x, params["w1_oihw"], params["s1"], params["b1"], 1)
    y = block(y, params["w2_oihw"], params["s2"], params["b2"], 2)
    return jnp.mean(y, axis=(2, 3))  # (B, 32)


if __name__ == "__main__":
    key = jax.random.PRNGKey(0)
    k_in, k_par = jax.random.split(key)
    # NCHW like PyTorch.  B=8 exercises the sub-batched grid: Bt=4 images per
    # step stacked along M, 2 "parallel" grid steps.
    x = jax.random.normal(k_in, (8, 4, 16, 16), jnp.float32)
    params = init_params(k_par)
    kconsts = prepare_kernel_constants(params, size=16)

    out = jax.block_until_ready(facenet_forward(x, kconsts))
    assert out.shape == (8, 32), out.shape

    ref = reference_forward(x, params)
    max_err = float(jnp.max(jnp.abs(out - ref)))
    # bf16 matmul operands with f32 accumulation -> loosened tolerance.
    assert jnp.allclose(out, ref, rtol=3e-2, atol=3e-2), max_err

    print("KERNEL_OK")
</pallas_src>

<mosaic_0001>
module attributes {stable_mosaic.version = 11 : i64} {
  func.func @_facenet_fused_kernel(%arg0: i32, %arg1: memref<4x8x128xf32, #tpu.memory_space<vmem>>, %arg2: memref<384x256xbf16, #tpu.memory_space<vmem>>, %arg3: memref<1x256xf32, #tpu.memory_space<vmem>>, %arg4: memref<512x256xbf16, #tpu.memory_space<vmem>>, %arg5: memref<1x256xf32, #tpu.memory_space<vmem>>, %arg6: memref<256x32xf32, #tpu.memory_space<vmem>>, %arg7: memref<1x4x32xf32, #tpu.memory_space<vmem>>) attributes {dimension_semantics = [#tpu.dimension_semantics<parallel>], iteration_bounds = array<i64: 2>, scalar_prefetch = 0 : i64, scratch_operands = 0 : i64, tpu.core_type = #tpu.core_type<tc>, window_params = [{transform_indices = @transform_0, window_bounds = array<i64: 4, 8, 128>}, {pipeline_mode = #tpu.pipeline_mode<synchronous>, transform_indices = @transform_1, window_bounds = array<i64: 384, 256>}, {pipeline_mode = #tpu.pipeline_mode<synchronous>, transform_indices = @transform_2, window_bounds = array<i64: 1, 256>}, {pipeline_mode = #tpu.pipeline_mode<synchronous>, transform_indices = @transform_3, window_bounds = array<i64: 512, 256>}, {pipeline_mode = #tpu.pipeline_mode<synchronous>, transform_indices = @transform_4, window_bounds = array<i64: 1, 256>}, {pipeline_mode = #tpu.pipeline_mode<synchronous>, transform_indices = @transform_5, window_bounds = array<i64: 256, 32>}, {transform_indices = @transform_6, window_bounds = array<i64: 1, 4, 32>}]} {
    %c0 = arith.constant 0 : index
    %c0_0 = arith.constant 0 : index
    %c0_1 = arith.constant 0 : index
    %0 = vector.load %arg1[%c0, %c0_0, %c0_1] : memref<4x8x128xf32, #tpu.memory_space<vmem>>, vector<4x8x128xf32>
    %1 = vector.shape_cast %0 : vector<4x8x128xf32> to vector<32x128xf32>
    %2 = tpu.iota {dimensions = array<i32: 0>} : vector<32x1xi32>
    %c8_i32 = arith.constant 8 : i32
    %c0_i32 = arith.constant 0 : i32
    %3 = arith.cmpi eq, %c8_i32, %c0_i32 : i32
    %c1_i32 = arith.constant 1 : i32
    %4 = arith.select %3, %c1_i32, %c8_i32 : i32
    %5 = vector.broadcast %4 : i32 to vector<32x1xi32>
    %6 = arith.remsi %2, %5 : vector<32x1xi32>
    %c0_i32_2 = arith.constant 0 : i32
    %7 = vector.broadcast %c0_i32_2 : i32 to vector<32x1xi32>
    %8 = arith.cmpi ne, %6, %7 : vector<32x1xi32>
    %c0_i32_3 = arith.constant 0 : i32
    %9 = vector.broadcast %c0_i32_3 : i32 to vector<32x1xi32>
    %10 = arith.cmpi slt, %6, %9 : vector<32x1xi32>
    %c0_i32_4 = arith.constant 0 : i32
    %11 = arith.cmpi slt, %4, %c0_i32_4 : i32
    %12 = vector.broadcast %11 : i1 to vector<32x1xi1>
    %13 = vector.broadcast %12 : vector<32x1xi1> to vector<32x1xi1>
    %14 = arith.xori %10, %13 : vector<32x1xi1>
    %15 = arith.andi %14, %8 : vector<32x1xi1>
    %16 = vector.broadcast %4 : i32 to vector<32x1xi32>
    %17 = arith.addi %6, %16 : vector<32x1xi32>
    %18 = arith.select %15, %17, %6 : vector<32x1xi1>, vector<32x1xi32>
    %c0_i32_5 = arith.constant 0 : i32
    %19 = vector.broadcast %c0_i32_5 : i32 to vector<32x1xi32>
    %20 = arith.cmpi eq, %18, %19 : vector<32x1xi32>
    %c1_i32_6 = arith.constant 1 : i32
    %21 = tpu.dynamic_rotate %1 by %c1_i32_6 dim 0 : vector<32x128xf32>, i32 -> vector<32x128xf32>
    %cst = arith.constant 0.000000e+00 : f32
    %22 = vector.shape_cast %20 : vector<32x1xi1> to vector<32x1xi1>
    %23 = vector.broadcast %22 : vector<32x1xi1> to vector<32x128xi1>
    %24 = vector.broadcast %cst : f32 to vector<32x128xf32>
    %25 = arith.select %23, %24, %21 : vector<32x128xi1>, vector<32x128xf32>
    %26 = arith.truncf %25 : vector<32x128xf32> to vector<32x128xbf16>
    %c7_i32 = arith.constant 7 : i32
    %27 = vector.broadcast %c7_i32 : i32 to vector<32x1xi32>
    %28 = arith.cmpi eq, %18, %27 : vector<32x1xi32>
    %c31_i32 = arith.constant 31 : i32
    %29 = tpu.dynamic_rotate %1 by %c31_i32 dim 0 : vector<32x128xf32>, i32 -> vector<32x128xf32>
    %cst_7 = arith.constant 0.000000e+00 : f32
    %30 = vector.shape_cast %28 : vector<32x1xi1> to vector<32x1xi1>
    %31 = vector.broadcast %30 : vector<32x1xi1> to vector<32x128xi1>
    %32 = vector.broadcast %cst_7 : f32 to vector<32x128xf32>
    %33 = arith.select %31, %32, %29 : vector<32x128xi1>, vector<32x128xf32>
    %34 = arith.truncf %33 : vector<32x128xf32> to vector<32x128xbf16>
    %35 = arith.truncf %1 : vector<32x128xf32> to vector<32x128xbf16>
    %36 = tpu.concatenate %26, %35, %34 in 1 : vector<32x128xbf16>, vector<32x128xbf16>, vector<32x128xbf16> -> vector<32x384xbf16>
    %c0_8 = arith.constant 0 : index
    %c0_9 = arith.constant 0 : index
    %37 = vector.load %arg2[%c0_8, %c0_9] : memref<384x256xbf16, #tpu.memory_space<vmem>>, vector<384x256xbf16>
    %cst_10 = arith.constant dense<0.000000e+00> : vector<32x256xf32>
    %38 = tpu.matmul %36, %37, %cst_10 {dimension_numbers = #tpu.dot_dimension_numbers<[1], [0], [0], [1], [0, 0, 1, 1], [], []>} : vector<32x384xbf16>, vector<384x256xbf16>, vector<32x256xf32> -> vector<32x256xf32>
    %c0_11 = arith.constant 0 : index
    %c0_12 = arith.constant 0 : index
    %39 = vector.load %arg3[%c0_11, %c0_12] : memref<1x256xf32, #tpu.memory_space<vmem>>, vector<1x256xf32>
    %40 = vector.broadcast %39 : vector<1x256xf32> to vector<32x256xf32>
    %41 = arith.addf %38, %40 : vector<32x256xf32>
    %cst_13 = arith.constant 0.000000e+00 : f32
    %42 = vector.broadcast %cst_13 : f32 to vector<32x256xf32>
    %43 = arith.maximumf %41, %42 : vector<32x256xf32>
    %c0_i32_14 = arith.constant 0 : i32
    %44 = vector.broadcast %c0_i32_14 : i32 to vector<32x1xi32>
    %45 = arith.cmpi eq, %18, %44 : vector<32x1xi32>
    %c1_i32_15 = arith.constant 1 : i32
    %46 = tpu.dynamic_rotate %43 by %c1_i32_15 dim 0 : vector<32x256xf32>, i32 -> vector<32x256xf32>
    %cst_16 = arith.constant 0.000000e+00 : f32
    %47 = vector.shape_cast %45 : vector<32x1xi1> to vector<32x1xi1>
    %48 = vector.broadcast %47 : vector<32x1xi1> to vector<32x256xi1>
    %49 = vector.broadcast %cst_16 : f32 to vector<32x256xf32>
    %50 = arith.select %48, %49, %46 : vector<32x256xi1>, vector<32x256xf32>
    %51 = arith.truncf %50 : vector<32x256xf32> to vector<32x256xbf16>
    %52 = arith.truncf %43 : vector<32x256xf32> to vector<32x256xbf16>
    %53 = tpu.concatenate %51, %52 in 1 : vector<32x256xbf16>, vector<32x256xbf16> -> vector<32x512xbf16>
    %c0_17 = arith.constant 0 : index
    %c0_18 = arith.constant 0 : index
    %54 = vector.load %arg4[%c0_17, %c0_18] : memref<512x256xbf16, #tpu.memory_space<vmem>>, vector<512x256xbf16>
    %cst_19 = arith.constant dense<0.000000e+00> : vector<32x256xf32>
    %55 = tpu.matmul %53, %54, %cst_19 {dimension_numbers = #tpu.dot_dimension_numbers<[1], [0], [0], [1], [0, 0, 1, 1], [], []>} : vector<32x512xbf16>, vector<512x256xbf16>, vector<32x256xf32> -> vector<32x256xf32>
    %c0_20 = arith.constant 0 : index
    %c0_21 = arith.constant 0 : index
    %56 = vector.load %arg5[%c0_20, %c0_21] : memref<1x256xf32, #tpu.memory_space<vmem>>, vector<1x256xf32>
    %57 = vector.broadcast %56 : vector<1x256xf32> to vector<32x256xf32>
    %58 = arith.addf %55, %57 : vector<32x256xf32>
    %cst_22 = arith.constant 0.000000e+00 : f32
    %59 = vector.broadcast %cst_22 : f32 to vector<32x256xf32>
    %60 = arith.maximumf %58, %59 : vector<32x256xf32>
    %61 = vector.shape_cast %60 : vector<32x256xf32> to vector<4x8x256xf32>
    %cst_23 = arith.constant dense<0.000000e+00> : vector<4x256xf32>
    %62 = vector.multi_reduction <add>, %61, %cst_23 [1] : vector<4x8x256xf32> to vector<4x256xf32>
    %c0_24 = arith.constant 0 : index
    %c0_25 = arith.constant 0 : index
    %63 = vector.load %arg6[%c0_24, %c0_25] : memref<256x32xf32, #tpu.memory_space<vmem>>, vector<256x32xf32>
    %cst_26 = arith.constant dense<0.000000e+00> : vector<4x32xf32>
    %64 = tpu.matmul %62, %63, %cst_26 {dimension_numbers = #tpu.dot_dimension_numbers<[1], [0], [0], [1], [0, 0, 1, 1], [], []>} : vector<4x256xf32>, vector<256x32xf32>, vector<4x32xf32> -> vector<4x32xf32>
    %c0_27 = arith.constant 0 : index
    %c0_28 = arith.constant 0 : index
    %c0_29 = arith.constant 0 : index
    %65 = vector.load %arg7[%c0_27, %c0_28, %c0_29] : memref<1x4x32xf32, #tpu.memory_space<vmem>>, vector<1x4x32xf32>
    %66 = vector.shape_cast %65 : vector<1x4x32xf32> to vector<4x32xf32>
    %67 = vector.shape_cast %64 : vector<4x32xf32> to vector<1x4x32xf32>
    tpu.vector_store %arg7[%c0_27, %c0_28, %c0_29], %67 {strides = array<i32>} : memref<1x4x32xf32, #tpu.memory_space<vmem>>, vector<1x4x32xf32>,
    return
  }
  func.func @transform_0(%arg0: i32) -> (i32, i32, i32) {
    %c0_i32 = arith.constant 0 : i32
    %c0_i32_0 = arith.constant 0 : i32
    %c0_i32_1 = arith.constant 0 : i32
    return %arg0, %c0_i32, %c0_i32_0 : i32, i32, i32
  }
  func.func @transform_1(%arg0: i32) -> (i32, i32) {
    %c0_i32 = arith.constant 0 : i32
    %c0_i32_0 = arith.constant 0 : i32
    %c0_i32_1 = arith.constant 0 : i32
    return %c0_i32, %c0_i32_0 : i32, i32
  }
  func.func @transform_2(%arg0: i32) -> (i32, i32) {
    %c0_i32 = arith.constant 0 : i32
    %c0_i32_0 = arith.constant 0 : i32
    %c0_i32_1 = arith.constant 0 : i32
    return %c0_i32, %c0_i32_0 : i32, i32
  }
  func.func @transform_3(%arg0: i32) -> (i32, i32) {
    %c0_i32 = arith.constant 0 : i32
    %c0_i32_0 = arith.constant 0 : i32
    %c0_i32_1 = arith.constant 0 : i32
    return %c0_i32, %c0_i32_0 : i32, i32
  }
  func.func @transform_4(%arg0: i32) -> (i32, i32) {
    %c0_i32 = arith.constant 0 : i32
    %c0_i32_0 = arith.constant 0 : i32
    %c0_i32_1 = arith.constant 0 : i32
    return %c0_i32, %c0_i32_0 : i32, i32
  }
  func.func @transform_5(%arg0: i32) -> (i32, i32) {
    %c0_i32 = arith.constant 0 : i32
    %c0_i32_0 = arith.constant 0 : i32
    %c0_i32_1 = arith.constant 0 : i32
    return %c0_i32, %c0_i32_0 : i32, i32
  }
  func.func @transform_6(%arg0: i32) -> (i32, i32, i32) {
    %c0_i32 = arith.constant 0 : i32
    %c0_i32_0 = arith.constant 0 : i32
    %c0_i32_1 = arith.constant 0 : i32
    return %arg0, %c0_i32, %c0_i32_0 : i32, i32, i32
  }
}

</mosaic_0001>

<llo_original>
// kernel: facenet_forward.1
$region0: #{facenet_forward.1}
  #allocation0 [shape = 'u32[]', space=smem, size = 0x4, offset = 0x4, fixed_abs, tag = 'smem constant byte address 0x4 - core index']
  #allocation1 [shape = 'u32[144,128]{1,0:T(1,128)}', space=vmem, size = 0x12000, scoped, tag = 'internal scratch']
  %s0 = inlined_call_operand.vmem [shape: f32[8,8,128], index: 0, kind: input, shape index: {}]
  %s1 = inlined_call_operand.vmem [shape: bf16[384,256], index: 1, kind: input, shape index: {}]
  %s2 = inlined_call_operand.vmem [shape: f32[1,256], index: 2, kind: input, shape index: {}]
  %s3 = inlined_call_operand.vmem [shape: bf16[512,256], index: 3, kind: input, shape index: {}]
  %s4 = inlined_call_operand.vmem [shape: f32[1,256], index: 4, kind: input, shape index: {}]
  %s5 = inlined_call_operand.vmem [shape: f32[256,32], index: 5, kind: input, shape index: {}]
  %s6 = inlined_call_operand.hbm [shape: f32[2,4,32], index: 6, kind: output, shape index: {}]
  %s7 = sld [smem:[#allocation0]]
  $region57: #{facenet_forward.1} parent=0
    _
  %s9 = ssub.s32 1, %s7
  %s10 = scalar_select 0, %s9, %s7
  $region1: #{facenet_forward.1} parent=0
    #allocation2 [shape = 'u8[4096]{0}', space=vmem, size = 0x1000, scoped, tag = 'output window, operand 0']
    #allocation3 [shape = 's32[2]{0}', space=sflag, size = 0x8, scoped, tag = 'scoped memory for facenet_forward.1']
    %11 = vsyncpa [#allocation3], 0
    %s12 = scalar_lea.sflag [#allocation3], 1
    %13 = vsyncpa %s12, 0
    loop: start=0, step=1, limit=4
    $region2: #{facenet_forward.1} parent=1 // loop_pre_header
      _
    $region3: #{facenet_forward.1} parent=1 // loop_header
      %s15 = sphi 0, %s19
      %p16 = scmp.ge.s32.totalorder %s15, 4
      %s25 = sphi 0, %s27
      %s28 = sphi 0, %s25
      %s29 = sphi 0, %s28
      %s45 = sphi 0, %s29
      %s49 = sphi 0, %s49
      %s51 = sphi 0, %s49
      %s52 = sphi 0, %s51
      %s66 = sphi 0, %s52
      %s70 = sphi 0, %s70
      %s72 = sphi 0, %s70
      %s73 = sphi 0, %s72
      %s87 = sphi 0, %s73
      %s91 = sphi 0, %s91
      %s93 = sphi 0, %s91
      %s94 = sphi 0, %s93
      %s108 = sphi 0, %s94
      %s112 = sphi 0, %s112
      %s114 = sphi 0, %s112
      %s115 = sphi 0, %s114
      %s129 = sphi 0, %s115
      %s133 = sphi 0, %s133
      %s135 = sphi 0, %s133
      %s136 = sphi 0, %s135
      %s150 = sphi 0, %s136
      %s156 = sphi 0, %s158
      %s159 = sphi 0, %s156
      %s160 = sphi 0, %s159
      %s176 = sphi 0, %s160
    $region4: #{facenet_forward.1} parent=1 // loop_header_branch
      %18 = sbr.rel (%p16) target = $region8
    $region5: #{facenet_forward.1} parent=1 // loop_body
      %s20 = ssub.s32 %s15, 1
      %s21 = ssub.s32 %s15, 2
      %s22 = sadd.s32 %s15, 1
      %s23 = ssub.s32 %s15, %s22
      %p24 = scmp.eq.s32.totalorder %s23, 0
      %s26 = sadd.s32 %s25, 1
      %s27 = scalar_select %p24, %s25, %s26
      %p30 = pneg %p24
      %p31 = scmp.eq.s32.totalorder %s15, 1
      %p32 = por %p30, %p31
      %p33 = scmp.ne.s32.totalorder %s25, %s28
      %p34 = scmp.eq.s32.totalorder %s15, 0
      %p35 = por %p33, %p34
      %p36 = scmp.ne.s32.totalorder %s25, %s28
      %p37 = scmp.eq.s32.totalorder %s20, 1
      %p38 = por %p36, %p37
      %p39 = scmp.ne.s32.totalorder %s28, %s29
      %p40 = scmp.eq.s32.totalorder %s20, 0
      %p41 = por %p39, %p40
      %p42 = scmp.ne.s32.totalorder %s28, %s29
      %p43 = scmp.eq.s32.totalorder %s21, 1
      %p44 = por %p42, %p43
      %p46 = scmp.ne.s32.totalorder %s29, %s45
      %p47 = scmp.eq.s32.totalorder %s21, 0
      %p48 = por %p46, %p47
      %s50 = sadd.s32 %s49, 1
      %p53 = scmp.eq.s32.totalorder %s15, 1
      %p54 = scmp.ne.s32.totalorder %s49, %s51
      %p55 = scmp.eq.s32.totalorder %s15, 0
      %p56 = por %p54, %p55
      %p57 = scmp.ne.s32.totalorder %s49, %s51
      %p58 = scmp.eq.s32.totalorder %s20, 1
      %p59 = por %p57, %p58
      %p60 = scmp.ne.s32.totalorder %s51, %s52
      %p61 = scmp.eq.s32.totalorder %s20, 0
      %p62 = por %p60, %p61
      %p63 = scmp.ne.s32.totalorder %s51, %s52
      %p64 = scmp.eq.s32.totalorder %s21, 1
      %p65 = por %p63, %p64
      %p67 = scmp.ne.s32.totalorder %s52, %s66
      %p68 = scmp.eq.s32.totalorder %s21, 0
      %p69 = por %p67, %p68
      %s71 = sadd.s32 %s70, 1
      %p74 = scmp.eq.s32.totalorder %s15, 1
      %p75 = scmp.ne.s32.totalorder %s70, %s72
      %p76 = scmp.eq.s32.totalorder %s15, 0
      %p77 = por %p75, %p76
      %p78 = scmp.ne.s32.totalorder %s70, %s72
      %p79 = scmp.eq.s32.totalorder %s20, 1
      %p80 = por %p78, %p79
      %p81 = scmp.ne.s32.totalorder %s72, %s73
      %p82 = scmp.eq.s32.totalorder %s20, 0
      %p83 = por %p81, %p82
      %p84 = scmp.ne.s32.totalorder %s72, %s73
      %p85 = scmp.eq.s32.totalorder %s21, 1
      %p86 = por %p84, %p85
      %p88 = scmp.ne.s32.totalorder %s73, %s87
      %p89 = scmp.eq.s32.totalorder %s21, 0
      %p90 = por %p88, %p89
      %s92 = sadd.s32 %s91, 1
      %p95 = scmp.eq.s32.totalorder %s15, 1
      %p96 = scmp.ne.s32.totalorder %s91, %s93
      %p97 = scmp.eq.s32.totalorder %s15, 0
      %p98 = por %p96, %p97
      %p99 = scmp.ne.s32.totalorder %s91, %s93
      %p100 = scmp.eq.s32.totalorder %s20, 1
      %p101 = por %p99, %p100
      %p102 = scmp.ne.s32.totalorder %s93, %s94
      %p103 = scmp.eq.s32.totalorder %s20, 0
      %p104 = por %p102, %p103
      %p105 = scmp.ne.s32.totalorder %s93, %s94
      %p106 = scmp.eq.s32.totalorder %s21, 1
      %p107 = por %p105, %p106
      %p109 = scmp.ne.s32.totalorder %s94, %s108
      %p110 = scmp.eq.s32.totalorder %s21, 0
      %p111 = por %p109, %p110
      %s113 = sadd.s32 %s112, 1
      %p116 = scmp.eq.s32.totalorder %s15, 1
      %p117 = scmp.ne.s32.totalorder %s112, %s114
      %p118 = scmp.eq.s32.totalorder %s15, 0
      %p119 = por %p117, %p118
      %p120 = scmp.ne.s32.totalorder %s112, %s114
      %p121 = scmp.eq.s32.totalorder %s20, 1
      %p122 = por %p120, %p121
      %p123 = scmp.ne.s32.totalorder %s114, %s115
      %p124 = scmp.eq.s32.totalorder %s20, 0
      %p125 = por %p123, %p124
      %p126 = scmp.ne.s32.totalorder %s114, %s115
      %p127 = scmp.eq.s32.totalorder %s21, 1
      %p128 = por %p126, %p127
      %p130 = scmp.ne.s32.totalorder %s115, %s129
      %p131 = scmp.eq.s32.totalorder %s21, 0
      %p132 = por %p130, %p131
      %s134 = sadd.s32 %s133, 1
      %p137 = scmp.eq.s32.totalorder %s15, 1
      %p138 = scmp.ne.s32.totalorder %s133, %s135
      %p139 = scmp.eq.s32.totalorder %s15, 0
      %p140 = por %p138, %p139
      %p141 = scmp.ne.s32.totalorder %s133, %s135
      %p142 = scmp.eq.s32.totalorder %s20, 1
      %p143 = por %p141, %p142
      %p144 = scmp.ne.s32.totalorder %s135, %s136
      %p145 = scmp.eq.s32.totalorder %s20, 0
      %p146 = por %p144, %p145
      %p147 = scmp.ne.s32.totalorder %s135, %s136
      %p148 = scmp.eq.s32.totalorder %s21, 1
      %p149 = por %p147, %p148
      %p151 = scmp.ne.s32.totalorder %s136, %s150
      %p152 = scmp.eq.s32.totalorder %s21, 0
      %p153 = por %p151, %p152
      %s154 = ssub.s32 %s15, %s22
      %p155 = scmp.eq.s32.totalorder %s154, 0
      %s157 = sadd.s32 %s156, 1
      %s158 = scalar_select %p155, %s156, %s157
      %p161 = pneg %p155
      %p162 = scmp.eq.s32.totalorder %s15, 1
      %p163 = por %p161, %p162
      %p164 = scmp.ne.s32.totalorder %s156, %s159
      %p165 = scmp.eq.s32.totalorder %s15, 0
      %p166 = por %p164, %p165
      %p167 = scmp.ne.s32.totalorder %s156, %s159
      %p168 = scmp.eq.s32.totalorder %s20, 1
      %p169 = por %p167, %p168
      %p170 = scmp.ne.s32.totalorder %s159, %s160
      %p171 = scmp.eq.s32.totalorder %s20, 0
      %p172 = por %p170, %p171
      %p173 = scmp.ne.s32.totalorder %s159, %s160
      %p174 = scmp.eq.s32.totalorder %s21, 1
      %p175 = por %p173, %p174
      %p177 = scmp.ne.s32.totalorder %s160, %s176
      %p178 = scmp.eq.s32.totalorder %s21, 0
      %p179 = por %p177, %p178
      %p180 = scmp.le.s32.totalorder 1, %s15
      %p181 = scmp.lt.s32.totalorder %s15, 3
      %p182 = pnand %p180, %p181
      %p183 = pneg %p182
      // Predicated region
      $region9: #{facenet_forward.1} parent=5 // pred_check
        _
      $region10: #{facenet_forward.1} parent=5 // pred_check_branch
        %185 = sbr.rel (%p182) target = $region12
      $region11: #{facenet_forward.1} parent=5 // pred_region
        %s186 = ssub.s32 %s15, 1
        // Predicated region
        $region13: #{facenet_forward.1} parent=11 // pred_check
          %p187 = pneg %p62
        $region14: #{facenet_forward.1} parent=11 // pred_check_branch
          %189 = sbr.rel (%p187) target = $region16
        $region15: #{facenet_forward.1} parent=11 // pred_region
          _
        $region16: #{facenet_forward.1} parent=11 // pred_fallthru
          _
        // Predicated region
        $region17: #{facenet_forward.1} parent=11 // pred_check
          %p190 = pneg %p83
        $region18: #{facenet_forward.1} parent=11 // pred_check_branch
          %192 = sbr.rel (%p190) target = $region20
        $region19: #{facenet_forward.1} parent=11 // pred_region
          _
        $region20: #{facenet_forward.1} parent=11 // pred_fallthru
          _
        // Predicated region
        $region21: #{facenet_forward.1} parent=11 // pred_check
          %p193 = pneg %p104
        $region22: #{facenet_forward.1} parent=11 // pred_check_branch
          %195 = sbr.rel (%p193) target = $region24
        $region23: #{facenet_forward.1} parent=11 // pred_region
          _
        $region24: #{facenet_forward.1} parent=11 // pred_fallthru
          _
        // Predicated region
        $region25: #{facenet_forward.1} parent=11 // pred_check
          %p196 = pneg %p125
        $region26: #{facenet_forward.1} parent=11 // pred_check_branch
          %198 = sbr.rel (%p196) target = $region28
        $region27: #{facenet_forward.1} parent=11 // pred_region
          _
        $region28: #{facenet_forward.1} parent=11 // pred_fallthru
          _
        // Predicated region
        $region29: #{facenet_forward.1} parent=11 // pred_check
          %p199 = pneg %p146
        $region30: #{facenet_forward.1} parent=11 // pred_check_branch
          %201 = sbr.rel (%p199) target = $region32
        $region31: #{facenet_forward.1} parent=11 // pred_region
          _
        $region32: #{facenet_forward.1} parent=11 // pred_fallthru
          _
      $region12: #{facenet_forward.1} parent=5 // pred_fallthru
        _
      %p202 = scmp.lt.s32.totalorder %s15, 2
      // Predicated region
      $region33: #{facenet_forward.1} parent=5 // pred_check
        %p203 = pneg %p202
      $region34: #{facenet_forward.1} parent=5 // pred_check_branch
        %205 = sbr.rel (%p203) target = $region36
      $region35: #{facenet_forward.1} parent=5 // pred_region
        // Predicated region
        $region37: #{facenet_forward.1} parent=35 // pred_check
          %p206 = pneg %p35
        $region38: #{facenet_forward.1} parent=35 // pred_check_branch
          %208 = sbr.rel (%p206) target = $region40
        $region39: #{facenet_forward.1} parent=35 // pred_region
          %s209 = smul.u32 4, %s15
          %p210 = scmp.lt.s32.totalorder %s209, 7
          %s211 = scalar_select %p210, %s209, 7
          %s212 = smul.addr %s211, 8
          %s213 = scalar_lea.vmem %s0, %s212
          %s214 = smul.u32 4, %s15
        $region40: #{facenet_forward.1} parent=35 // pred_fallthru
          _
      $region36: #{facenet_forward.1} parent=5 // pred_fallthru
        _
      %p215 = scmp.le.s32.totalorder 1, %s15
      %p216 = scmp.lt.s32.totalorder %s15, 3
      %p217 = pnand %p215, %p216
      %p218 = pneg %p217
      // Predicated region
      $region41: #{facenet_forward.1} parent=5 // pred_check
        _
      $region42: #{facenet_forward.1} parent=5 // pred_check_branch
        %220 = sbr.rel (%p217) target = $region44
      $region43: #{facenet_forward.1} parent=5 // pred_region
        %s221 = ssub.s32 %s15, 1
        %s222 = smul.u32 4, %s20
        %p223 = scmp.lt.s32.totalorder %s222, 7
        %s224 = scalar_select %p223, %s222, 7
        %s225 = smul.addr %s224, 8
        %s226 = scalar_lea.vmem %s0, %s225
        %p227 = pneg %p41
        %p228 = pneg %p38
        %p229 = pneg %p62
        %p230 = pneg %p59
        %p231 = pneg %p83
        %p232 = pneg %p80
        %p233 = pneg %p104
        %p234 = pneg %p101
        %p235 = pneg %p125
        %p236 = pneg %p122
        %p237 = pneg %p146
        %p238 = pneg %p143
        %p239 = pneg %p172
        %p240 = pneg %p169
        %s241 = sand.u32 %s159, 1
        %s242 = scalar_lea.sflag [#allocation3], %s241
        %s243 = sand.u32 %s159, 1
        %s244 = smul.addr %s243, 4
        %s245 = scalar_lea.vmem [#allocation2], %s244
        %s246 = smul.u32 4, %s20
        %p247 = scmp.lt.s32.totalorder %s246, 7
        %s248 = scalar_select %p247, %s246, 7
        %s249 = smul.addr %s248, 8
        %s250 = scalar_lea.vmem %s0, %s249
        %s251 = smul.u32 4, %s20
        %v253 = vld [vmem:[%s250] sm:$0xff]
        %v254 = vld [vmem:[%s250 + $0x8] sm:$0xff]
        %v255 = vld [vmem:[%s250 + $0x10] sm:$0xff]
        %v256 = vld [vmem:[%s250 + $0x18] sm:$0xff]
        %v257 = vlaneseq
        %v258 = vshrl.u32 %v257, 7
        %v259 = vadd.s32 %v258, 8
        %v260 = vadd.s32 %v258, 16
        %v261 = vadd.s32 %v258, 24
        %vm262 = vcmp.lt.s32.totalorder %v258, 0
        %v263 = vsub.s32 0, %v258
        %v264 = vsel %vm262, %v263, %v258
        %v265 = vshrl.u32 %v264, 3
        %v266 = vand.u32 %v264, 7
        %v267 = vsub.s32 0, %v266
        %v268 = vsel %vm262, %v267, %v266
        %vm269 = vcmp.lt.s32.totalorder %v259, 0
        %v270 = vsub.s32 0, %v259
        %v271 = vsel %vm269, %v270, %v259
        %v272 = vshrl.u32 %v271, 3
        %v273 = vand.u32 %v271, 7
        %v274 = vsub.s32 0, %v273
        %v275 = vsel %vm269, %v274, %v273
        %vm276 = vcmp.lt.s32.totalorder %v260, 0
        %v277 = vsub.s32 0, %v260
        %v278 = vsel %vm276, %v277, %v260
        %v279 = vshrl.u32 %v278, 3
        %v280 = vand.u32 %v278, 7
        %v281 = vsub.s32 0, %v280
        %v282 = vsel %vm276, %v281, %v280
        %vm283 = vcmp.lt.s32.totalorder %v261, 0
        %v284 = vsub.s32 0, %v261
        %v285 = vsel %vm283, %v284, %v261
        %v286 = vshrl.u32 %v285, 3
        %v287 = vand.u32 %v285, 7
        %v288 = vsub.s32 0, %v287
        %v289 = vsel %vm283, %v288, %v287
        %vm290 = vcmp.ne.s32.totalorder %v268, 0
        %vm291 = vcmp.ne.s32.totalorder %v275, 0
        %vm292 = vcmp.ne.s32.totalorder %v282, 0
        %vm293 = vcmp.ne.s32.totalorder %v289, 0
        %vm294 = vcmp.lt.s32.totalorder %v268, 0
        %vm295 = vcmp.lt.s32.totalorder %v275, 0
        %vm296 = vcmp.lt.s32.totalorder %v282, 0
        %vm297 = vcmp.lt.s32.totalorder %v289, 0
        %vm298 = vmand %vm294, %vm290
        %vm299 = vmand %vm295, %vm291
        %vm300 = vmand %vm296, %vm292
        %vm301 = vmand %vm297, %vm293
        %v302 = vadd.s32 %v268, 8
        %v303 = vadd.s32 %v275, 8
        %v304 = vadd.s32 %v282, 8
        %v305 = vadd.s32 %v289, 8
        %v306 = vsel %vm298, %v302, %v268
        %v307 = vsel %vm299, %v303, %v275
        %v308 = vsel %vm300, %v304, %v282
        %v309 = vsel %vm301, %v305, %v289
        %vm310 = vcmp.eq.s32.totalorder %v306, 0
        %vm311 = vcmp.eq.s32.totalorder %v307, 0
        %vm312 = vcmp.eq.s32.totalorder %v308, 0
        %vm313 = vcmp.eq.s32.totalorder %v309, 0
        %v314 = vrot.slane %v253, 7
        %v315 = vrot.slane %v254, 7
        %v316 = vrot.slane %v255, 7
        %v317 = vrot.slane %v256, 7
        %vm318 = vcmp.lt.s32.totalorder %v258, 1
        %v319 = vsel %vm318, %v316, %v317
        %v320 = vsel %vm318, %v315, %v316
        %v321 = vsel %vm318, %v314, %v315
        %v322 = vsel %vm318, %v317, %v314
        %v323 = vsel %vm310, 1, 0
        %v324 = vsel %vm311, 1, 0
        %v325 = vsel %vm312, 1, 0
        %v326 = vsel %vm313, 1, 0
        %vm327 = vcmp.eq.s32.totalorder %v323, 1
        %vm328 = vcmp.eq.s32.totalorder %v324, 1
        %vm329 = vcmp.eq.s32.totalorder %v325, 1
        %vm330 = vcmp.eq.s32.totalorder %v326, 1
        %v331 = vsel %vm327, 0.0, %v322
        %v332 = vsel %vm328, 0.0, %v321
        %v333 = vsel %vm329, 0.0, %v320
        %v334 = vsel %vm330, 0.0, %v319
        %v335 = vpack.c.bf16 %v332, %v331
        %v336 = vpack.c.bf16 %v334, %v333
        %vm337 = vcmp.eq.s32.totalorder %v306, 7
        %vm338 = vcmp.eq.s32.totalorder %v307, 7
        %vm339 = vcmp.eq.s32.totalorder %v308, 7
        %vm340 = vcmp.eq.s32.totalorder %v309, 7
        %v341 = vrot.slane %v253, 1
        %v342 = vrot.slane %v254, 1
        %v343 = vrot.slane %v255, 1
        %v344 = vrot.slane %v256, 1
        %vm345 = vcmp.lt.s32.totalorder %v258, 7
        %v346 = vsel %vm345, %v343, %v344
        %v347 = vsel %vm345, %v342, %v343
        %v348 = vsel %vm345, %v341, %v342
        %v349 = vsel %vm345, %v344, %v341
        %v350 = vsel %vm337, 1, 0
        %v351 = vsel %vm338, 1, 0
        %v352 = vsel %vm339, 1, 0
        %v353 = vsel %vm340, 1, 0
        %vm354 = vcmp.eq.s32.totalorder %v350, 1
        %vm355 = vcmp.eq.s32.totalorder %v351, 1
        %vm356 = vcmp.eq.s32.totalorder %v352, 1
        %vm357 = vcmp.eq.s32.totalorder %v353, 1
        %v358 = vsel %vm354, 0.0, %v348
        %v359 = vsel %vm355, 0.0, %v347
        %v360 = vsel %vm356, 0.0, %v346
        %v361 = vsel %vm357, 0.0, %v349
        %v362 = vpack.c.bf16 %v359, %v358
        %v363 = vpack.c.bf16 %v361, %v360
        %v364 = vpack.c.bf16 %v254, %v253
        %v365 = vpack.c.bf16 %v256, %v255
        %v366 = vld [vmem:[%s1] sm:$0xff]
        %v367 = vld [vmem:[%s1 + $0x8] sm:$0xff]
        %v368 = vld [vmem:[%s1 + $0x10] sm:$0xff]
        %v369 = vld [vmem:[%s1 + $0x18] sm:$0xff]
        %v370 = vld [vmem:[%s1 + $0x20] sm:$0xff]
        %v371 = vld [vmem:[%s1 + $0x28] sm:$0xff]
        %v372 = vld [vmem:[%s1 + $0x30] sm:$0xff]
        %v373 = vld [vmem:[%s1 + $0x38] sm:$0xff]
        %v374 = vld [vmem:[%s1 + $0x40] sm:$0xff]
        %v375 = vld [vmem:[%s1 + $0x48] sm:$0xff]
        %v376 = vld [vmem:[%s1 + $0x50] sm:$0xff]
        %v377 = vld [vmem:[%s1 + $0x58] sm:$0xff]
        %v378 = vld [vmem:[%s1 + $0x60] sm:$0xff]
        %v379 = vld [vmem:[%s1 + $0x68] sm:$0xff]
        %v380 = vld [vmem:[%s1 + $0x70] sm:$0xff]
        %v381 = vld [vmem:[%s1 + $0x78] sm:$0xff]
        %v382 = vld [vmem:[%s1 + $0x80] sm:$0xff]
        %v383 = vld [vmem:[%s1 + $0x88] sm:$0xff]
        %v384 = vld [vmem:[%s1 + $0x90] sm:$0xff]
        %v385 = vld [vmem:[%s1 + $0x98] sm:$0xff]
        %v386 = vld [vmem:[%s1 + $0xa0] sm:$0xff]
        %v387 = vld [vmem:[%s1 + $0xa8] sm:$0xff]
        %v388 = vld [vmem:[%s1 + $0xb0] sm:$0xff]
        %v389 = vld [vmem:[%s1 + $0xb8] sm:$0xff]
        %v390 = vld [vmem:[%s1 + $0xc0] sm:$0xff]
        %v391 = vld [vmem:[%s1 + $0xc8] sm:$0xff]
        %v392 = vld [vmem:[%s1 + $0xd0] sm:$0xff]
        %v393 = vld [vmem:[%s1 + $0xd8] sm:$0xff]
        %v394 = vld [vmem:[%s1 + $0xe0] sm:$0xff]
        %v395 = vld [vmem:[%s1 + $0xe8] sm:$0xff]
        %v396 = vld [vmem:[%s1 + $0xf0] sm:$0xff]
        %v397 = vld [vmem:[%s1 + $0xf8] sm:$0xff]
        %v398 = vld [vmem:[%s1 + $0x100] sm:$0xff]
        %v399 = vld [vmem:[%s1 + $0x108] sm:$0xff]
        %v400 = vld [vmem:[%s1 + $0x110] sm:$0xff]
        %v401 = vld [vmem:[%s1 + $0x118] sm:$0xff]
        %v402 = vld [vmem:[%s1 + $0x120] sm:$0xff]
        %v403 = vld [vmem:[%s1 + $0x128] sm:$0xff]
        %v404 = vld [vmem:[%s1 + $0x130] sm:$0xff]
        %v405 = vld [vmem:[%s1 + $0x138] sm:$0xff]
        %v406 = vld [vmem:[%s1 + $0x140] sm:$0xff]
        %v407 = vld [vmem:[%s1 + $0x148] sm:$0xff]
        %v408 = vld [vmem:[%s1 + $0x150] sm:$0xff]
        %v409 = vld [vmem:[%s1 + $0x158] sm:$0xff]
        %v410 = vld [vmem:[%s1 + $0x160] sm:$0xff]
        %v411 = vld [vmem:[%s1 + $0x168] sm:$0xff]
        %v412 = vld [vmem:[%s1 + $0x170] sm:$0xff]
        %v413 = vld [vmem:[%s1 + $0x178] sm:$0xff]
        %v414 = vld [vmem:[%s2] sm:$0x3]
        %v416 = vlaneseq
        %v417 = vshrl.u32 %v416, 7
        %v418 = vsub.s32 0, %v417
        %v419 = vrot.slane %v414, %v418
        %v420 = vlaneseq
        %v421 = vshrl.u32 %v420, 7
        %v422 = vsub.s32 1, %v421
        %v423 = vrot.slane %v414, %v422
        %v474 = vunpack.c.l.b16 %v366
        %v475 = vunpack.c.h.b16 %v366
        %v476 = vunpack.c.l.b16 %v367
        %v477 = vunpack.c.h.b16 %v367
        %v478 = vunpack.c.l.b16 %v368
        %v479 = vunpack.c.h.b16 %v368
        %v480 = vunpack.c.l.b16 %v369
        %v481 = vunpack.c.h.b16 %v369
        %v482 = vunpack.c.l.b16 %v370
        %v483 = vunpack.c.h.b16 %v370
        %v484 = vunpack.c.l.b16 %v371
        %v485 = vunpack.c.h.b16 %v371
        %v486 = vunpack.c.l.b16 %v372
        %v487 = vunpack.c.h.b16 %v372
        %v488 = vunpack.c.l.b16 %v373
        %v489 = vunpack.c.h.b16 %v373
        %v490 = vunpack.c.l.b16 %v374
        %v491 = vunpack.c.h.b16 %v374
        %v492 = vunpack.c.l.b16 %v375
        %v493 = vunpack.c.h.b16 %v375
        %v494 = vunpack.c.l.b16 %v376
        %v495 = vunpack.c.h.b16 %v376
        %v496 = vunpack.c.l.b16 %v377
        %v497 = vunpack.c.h.b16 %v377
        %v498 = vunpack.c.l.b16 %v378
        %v499 = vunpack.c.h.b16 %v378
        %v500 = vunpack.c.l.b16 %v379
        %v501 = vunpack.c.h.b16 %v379
        %v502 = vunpack.c.l.b16 %v380
        %v503 = vunpack.c.h.b16 %v380
        %v504 = vunpack.c.l.b16 %v381
        %v505 = vunpack.c.h.b16 %v381
        %v506 = vunpack.c.l.b16 %v382
        %v507 = vunpack.c.h.b16 %v382
        %v508 = vunpack.c.l.b16 %v383
        %v509 = vunpack.c.h.b16 %v383
        %v510 = vunpack.c.l.b16 %v384
        %v511 = vunpack.c.h.b16 %v384
        %v512 = vunpack.c.l.b16 %v385
        %v513 = vunpack.c.h.b16 %v385
        %v514 = vunpack.c.l.b16 %v386
        %v515 = vunpack.c.h.b16 %v386
        %v516 = vunpack.c.l.b16 %v387
        %v517 = vunpack.c.h.b16 %v387
        %v518 = vunpack.c.l.b16 %v388
        %v519 = vunpack.c.h.b16 %v388
        %v520 = vunpack.c.l.b16 %v389
        %v521 = vunpack.c.h.b16 %v389
        %v522 = vunpack.c.l.b16 %v390
        %v523 = vunpack.c.h.b16 %v390
        %v524 = vunpack.c.l.b16 %v391
        %v525 = vunpack.c.h.b16 %v391
        %v526 = vunpack.c.l.b16 %v392
        %v527 = vunpack.c.h.b16 %v392
        %v528 = vunpack.c.l.b16 %v393
        %v529 = vunpack.c.h.b16 %v393
        %v530 = vunpack.c.l.b16 %v394
        %v531 = vunpack.c.h.b16 %v394
        %v532 = vunpack.c.l.b16 %v395
        %v533 = vunpack.c.h.b16 %v395
        %v534 = vunpack.c.l.b16 %v396
        %v535 = vunpack.c.h.b16 %v396
        %v536 = vunpack.c.l.b16 %v397
        %v537 = vunpack.c.h.b16 %v397
        %v538 = vunpack.c.l.b16 %v398
        %v539 = vunpack.c.h.b16 %v398
        %v540 = vunpack.c.l.b16 %v399
        %v541 = vunpack.c.h.b16 %v399
        %v542 = vunpack.c.l.b16 %v400
        %v543 = vunpack.c.h.b16 %v400
        %v544 = vunpack.c.l.b16 %v401
        %v545 = vunpack.c.h.b16 %v401
        %v546 = vunpack.c.l.b16 %v402
        %v547 = vunpack.c.h.b16 %v402
        %v548 = vunpack.c.l.b16 %v403
        %v549 = vunpack.c.h.b16 %v403
        %v550 = vunpack.c.l.b16 %v404
        %v551 = vunpack.c.h.b16 %v404
        %v552 = vunpack.c.l.b16 %v405
        %v553 = vunpack.c.h.b16 %v405
        %v554 = vunpack.c.l.b16 %v406
        %v555 = vunpack.c.h.b16 %v406
        %v556 = vunpack.c.l.b16 %v407
        %v557 = vunpack.c.h.b16 %v407
        %v558 = vunpack.c.l.b16 %v408
        %v559 = vunpack.c.h.b16 %v408
        %v560 = vunpack.c.l.b16 %v409
        %v561 = vunpack.c.h.b16 %v409
        %v562 = vunpack.c.l.b16 %v410
        %v563 = vunpack.c.h.b16 %v410
        %v564 = vunpack.c.l.b16 %v411
        %v565 = vunpack.c.h.b16 %v411
        %v566 = vunpack.c.l.b16 %v412
        %v567 = vunpack.c.h.b16 %v412
        %v568 = vunpack.c.l.b16 %v413
        %v569 = vunpack.c.h.b16 %v413
        %v570 = vpack.c.b16 %v476, %v474
        %v571 = vpack.c.b16 %v477, %v475
        %v572 = vpack.c.b16 %v480, %v478
        %v573 = vpack.c.b16 %v481, %v479
        %v574 = vpack.c.b16 %v484, %v482
        %v575 = vpack.c.b16 %v485, %v483
        %v576 = vpack.c.b16 %v488, %v486
        %v577 = vpack.c.b16 %v489, %v487
        %v578 = vpack.c.b16 %v492, %v490
        %v579 = vpack.c.b16 %v493, %v491
        %v580 = vpack.c.b16 %v496, %v494
        %v581 = vpack.c.b16 %v497, %v495
        %v582 = vpack.c.b16 %v500, %v498
        %v583 = vpack.c.b16 %v501, %v499
        %v584 = vpack.c.b16 %v504, %v502
        %v585 = vpack.c.b16 %v505, %v503
        %v586 = vpack.c.b16 %v508, %v506
        %v587 = vpack.c.b16 %v509, %v507
        %v588 = vpack.c.b16 %v512, %v510
        %v589 = vpack.c.b16 %v513, %v511
        %v590 = vpack.c.b16 %v516, %v514
        %v591 = vpack.c.b16 %v517, %v515
        %v592 = vpack.c.b16 %v520, %v518
        %v593 = vpack.c.b16 %v521, %v519
        %v594 = vpack.c.b16 %v524, %v522
        %v595 = vpack.c.b16 %v525, %v523
        %v596 = vpack.c.b16 %v528, %v526
        %v597 = vpack.c.b16 %v529, %v527
        %v598 = vpack.c.b16 %v532, %v530
        %v599 = vpack.c.b16 %v533, %v531
        %v600 = vpack.c.b16 %v536, %v534
        %v601 = vpack.c.b16 %v537, %v535
        %v602 = vpack.c.b16 %v540, %v538
        %v603 = vpack.c.b16 %v541, %v539
        %v604 = vpack.c.b16 %v544, %v542
        %v605 = vpack.c.b16 %v545, %v543
        %v606 = vpack.c.b16 %v548, %v546
        %v607 = vpack.c.b16 %v549, %v547
        %v608 = vpack.c.b16 %v552, %v550
        %v609 = vpack.c.b16 %v553, %v551
        %v610 = vpack.c.b16 %v556, %v554
        %v611 = vpack.c.b16 %v557, %v555
        %v612 = vpack.c.b16 %v560, %v558
        %v613 = vpack.c.b16 %v561, %v559
        %v614 = vpack.c.b16 %v564, %v562
        %v615 = vpack.c.b16 %v565, %v563
        %v616 = vpack.c.b16 %v568, %v566
        %v617 = vpack.c.b16 %v569, %v567
        %666 = vmatprep.subr.bf16.mxu0 %v571
        %667 = vmatpush1.bf16.msra.mxu0 %v570
        %668 = vmatprep.subr.bf16.mxu0 %v573
        %669 = vmatpush1.bf16.msra.mxu0 %v572
        %670 = vmatprep.subr.bf16.mxu0 %v575
        %671 = vmatpush1.bf16.msra.mxu0 %v574
        %672 = vmatprep.subr.bf16.mxu0 %v577
        %673 = vmatpush1.bf16.msra.mxu0 %v576
        %674 = vmatprep.subr.bf16.mxu0 %v579
        %675 = vmatpush1.bf16.msra.mxu0 %v578
        %676 = vmatprep.subr.bf16.mxu0 %v581
        %677 = vmatpush1.bf16.msra.mxu0 %v580
        %678 = vmatprep.subr.bf16.mxu0 %v583
        %679 = vmatpush1.bf16.msra.mxu0 %v582
        %680 = vmatprep.subr.bf16.mxu0 %v585
        %681 = vmatpush1.bf16.msra.mxu0 %v584
        %682 = vmatprep.subr.bf16.mxu0 %v587
        %683 = vmatpush1.bf16.msra.mxu0 %v586
        %684 = vmatprep.subr.bf16.mxu0 %v589
        %685 = vmatpush1.bf16.msra.mxu0 %v588
        %686 = vmatprep.subr.bf16.mxu0 %v591
        %687 = vmatpush1.bf16.msra.mxu0 %v590
        %688 = vmatprep.subr.bf16.mxu0 %v593
        %689 = vmatpush1.bf16.msra.mxu0 %v592
        %690 = vmatprep.subr.bf16.mxu0 %v595
        %691 = vmatpush1.bf16.msra.mxu0 %v594
        %692 = vmatprep.subr.bf16.mxu0 %v597
        %693 = vmatpush1.bf16.msra.mxu0 %v596
        %694 = vmatprep.subr.bf16.mxu0 %v599
        %695 = vmatpush1.bf16.msra.mxu0 %v598
        %696 = vmatprep.subr.bf16.mxu0 %v601
        %697 = vmatpush1.bf16.msra.mxu0 %v600
        %698 = vmatprep.mubr.bf16.mxu0 %v364
        %699 = vmatmul.mubr.bf16.gmra.mrb[0].mxu0 %v335
        %v700 = vpop.f32.mrb[0].mxu0
        %v701 = vadd.f32 %v419, %v700
        %v702 = vpop.f32.mrb[0].mxu0
        %v703 = vadd.f32 %v423, %v702
        %v704 = vpop.f32.mrb[0].mxu0
        %v705 = vadd.f32 %v419, %v704
        %v706 = vpop.f32.mrb[0].mxu0
        %v707 = vadd.f32 %v423, %v706
        %708 = vmatprep.mubr.bf16.mxu0 %v365
        %709 = vmatmul.mubr.bf16.gmra.mrb[0].mxu0 %v336
        %v710 = vpop.f32.mrb[0].mxu0
        %v711 = vadd.f32 %v419, %v710
        %v712 = vpop.f32.mrb[0].mxu0
        %v713 = vadd.f32 %v423, %v712
        %v714 = vpop.f32.mrb[0].mxu0
        %v715 = vadd.f32 %v419, %v714
        %v716 = vpop.f32.mrb[0].mxu0
        %v717 = vadd.f32 %v423, %v716
        %718 = vdwg.mxu0
        %719 = vmatprep.subr.bf16.mxu0 %v603
        %720 = vmatpush1.bf16.msra.mxu0 %v602
        %721 = vmatprep.subr.bf16.mxu0 %v605
        %722 = vmatpush1.bf16.msra.mxu0 %v604
        %723 = vmatprep.subr.bf16.mxu0 %v607
        %724 = vmatpush1.bf16.msra.mxu0 %v606
        %725 = vmatprep.subr.bf16.mxu0 %v609
        %726 = vmatpush1.bf16.msra.mxu0 %v608
        %727 = vmatprep.subr.bf16.mxu0 %v611
        %728 = vmatpush1.bf16.msra.mxu0 %v610
        %729 = vmatprep.subr.bf16.mxu0 %v613
        %730 = vmatpush1.bf16.msra.mxu0 %v612
        %731 = vmatprep.subr.bf16.mxu0 %v615
        %732 = vmatpush1.bf16.msra.mxu0 %v614
        %733 = vmatprep.subr.bf16.mxu0 %v617
        %734 = vmatpush1.bf16.msra.mxu0 %v616
        %735 = vmatprep.subr.bf16.mxu0 0
        %736 = vmatpush1.bf16.msra.mxu0 0
        %737 = vmatprep.subr.bf16.mxu0 0
        %738 = vmatpush1.bf16.msra.mxu0 0
        %739 = vmatprep.subr.bf16.mxu0 0
        %740 = vmatpush1.bf16.msra.mxu0 0
        %741 = vmatprep.subr.bf16.mxu0 0
        %742 = vmatpush1.bf16.msra.mxu0 0
        %743 = vmatprep.subr.bf16.mxu0 0
        %744 = vmatpush1.bf16.msra.mxu0 0
        %745 = vmatprep.subr.bf16.mxu0 0
        %746 = vmatpush1.bf16.msra.mxu0 0
        %747 = vmatprep.subr.bf16.mxu0 0
        %748 = vmatpush1.bf16.msra.mxu0 0
        %749 = vmatprep.subr.bf16.mxu0 0
        %750 = vmatpush1.bf16.msra.mxu0 0
        %751 = vmatprep.mubr.bf16.mxu0 0
        %752 = vmatmul.mubr.bf16.gmra.mrb[0].mxu0 %v362
        %v753 = vpop.f32.mrb[0].mxu0
        %v754 = vadd.f32 %v701, %v753
        %v755 = vpop.f32.mrb[0].mxu0
        %v756 = vadd.f32 %v703, %v755
        %v757 = vpop.f32.mrb[0].mxu0
        %v758 = vadd.f32 %v705, %v757
        %v759 = vpop.f32.mrb[0].mxu0
        %v760 = vadd.f32 %v707, %v759
        %761 = vmatprep.mubr.bf16.mxu0 0
        %762 = vmatmul.mubr.bf16.gmra.mrb[0].mxu0 %v363
        %v763 = vpop.f32.mrb[0].mxu0
        %v764 = vadd.f32 %v711, %v763
        %v765 = vpop.f32.mrb[0].mxu0
        %v766 = vadd.f32 %v713, %v765
        %v767 = vpop.f32.mrb[0].mxu0
        %v768 = vadd.f32 %v715, %v767
        %v769 = vpop.f32.mrb[0].mxu0
        %v770 = vadd.f32 %v717, %v769
        %771 = vdwg.mxu0
        %v772 = vmax.f32 %v754, 0.0
        %v773 = vmax.f32 %v756, 0.0
        %v774 = vmax.f32 %v758, 0.0
        %v775 = vmax.f32 %v760, 0.0
        %v776 = vmax.f32 %v764, 0.0
        %v777 = vmax.f32 %v766, 0.0
        %v778 = vmax.f32 %v768, 0.0
        %v779 = vmax.f32 %v770, 0.0
        %v780 = vrot.slane %v772, 7
        %v781 = vrot.slane %v773, 7
        %v782 = vrot.slane %v774, 7
        %v783 = vrot.slane %v775, 7
        %v784 = vrot.slane %v776, 7
        %v785 = vrot.slane %v777, 7
        %v786 = vrot.slane %v778, 7
        %v787 = vrot.slane %v779, 7
        %v788 = vsel %vm318, %v784, %v786
        %v789 = vsel %vm318, %v785, %v787
        %v790 = vsel %vm318, %v782, %v784
        %v791 = vsel %vm318, %v783, %v785
        %v792 = vsel %vm318, %v780, %v782
        %v793 = vsel %vm318, %v781, %v783
        %v794 = vsel %vm318, %v786, %v780
        %v795 = vsel %vm318, %v787, %v781
        %v796 = vsel %vm327, 0.0, %v794
        %v797 = vsel %vm327, 0.0, %v795
        %v798 = vsel %vm328, 0.0, %v792
        %v799 = vsel %vm328, 0.0, %v793
        %v800 = vsel %vm329, 0.0, %v790
        %v801 = vsel %vm329, 0.0, %v791
        %v802 = vsel %vm330, 0.0, %v788
        %v803 = vsel %vm330, 0.0, %v789
        %v804 = vpack.c.bf16 %v798, %v796
        %v805 = vpack.c.bf16 %v799, %v797
        %v806 = vpack.c.bf16 %v802, %v800
        %v807 = vpack.c.bf16 %v803, %v801
        %v808 = vpack.c.bf16 %v774, %v772
        %v809 = vpack.c.bf16 %v775, %v773
        %v810 = vpack.c.bf16 %v778, %v776
        %v811 = vpack.c.bf16 %v779, %v777
        %v812 = vld [vmem:[%s3] sm:$0xff]
        %v813 = vld [vmem:[%s3 + $0x8] sm:$0xff]
        %v814 = vld [vmem:[%s3 + $0x10] sm:$0xff]
        %v815 = vld [vmem:[%s3 + $0x18] sm:$0xff]
        %v816 = vld [vmem:[%s3 + $0x20] sm:$0xff]
        %v817 = vld [vmem:[%s3 + $0x28] sm:$0xff]
        %v818 = vld [vmem:[%s3 + $0x30] sm:$0xff]
        %v819 = vld [vmem:[%s3 + $0x38] sm:$0xff]
        %v820 = vld [vmem:[%s3 + $0x40] sm:$0xff]
        %v821 = vld [vmem:[%s3 + $0x48] sm:$0xff]
        %v822 = vld [vmem:[%s3 + $0x50] sm:$0xff]
        %v823 = vld [vmem:[%s3 + $0x58] sm:$0xff]
        %v824 = vld [vmem:[%s3 + $0x60] sm:$0xff]
        %v825 = vld [vmem:[%s3 + $0x68] sm:$0xff]
        %v826 = vld [vmem:[%s3 + $0x70] sm:$0xff]
        %v827 = vld [vmem:[%s3 + $0x78] sm:$0xff]
        %v828 = vld [vmem:[%s3 + $0x80] sm:$0xff]
        %v829 = vld [vmem:[%s3 + $0x88] sm:$0xff]
        %v830 = vld [vmem:[%s3 + $0x90] sm:$0xff]
        %v831 = vld [vmem:[%s3 + $0x98] sm:$0xff]
        %v832 = vld [vmem:[%s3 + $0xa0] sm:$0xff]
        %v833 = vld [vmem:[%s3 + $0xa8] sm:$0xff]
        %v834 = vld [vmem:[%s3 + $0xb0] sm:$0xff]
        %v835 = vld [vmem:[%s3 + $0xb8] sm:$0xff]
        %v836 = vld [vmem:[%s3 + $0xc0] sm:$0xff]
        %v837 = vld [vmem:[%s3 + $0xc8] sm:$0xff]
        %v838 = vld [vmem:[%s3 + $0xd0] sm:$0xff]
        %v839 = vld [vmem:[%s3 + $0xd8] sm:$0xff]
        %v840 = vld [vmem:[%s3 + $0xe0] sm:$0xff]
        %v841 = vld [vmem:[%s3 + $0xe8] sm:$0xff]
        %v842 = vld [vmem:[%s3 + $0xf0] sm:$0xff]
        %v843 = vld [vmem:[%s3 + $0xf8] sm:$0xff]
        %v844 = vld [vmem:[%s3 + $0x100] sm:$0xff]
        %v845 = vld [vmem:[%s3 + $0x108] sm:$0xff]
        %v846 = vld [vmem:[%s3 + $0x110] sm:$0xff]
        %v847 = vld [vmem:[%s3 + $0x118] sm:$0xff]
        %v848 = vld [vmem:[%s3 + $0x120] sm:$0xff]
        %v849 = vld [vmem:[%s3 + $0x128] sm:$0xff]
        %v850 = vld [vmem:[%s3 + $0x130] sm:$0xff]
        %v851 = vld [vmem:[%s3 + $0x138] sm:$0xff]
        %v852 = vld [vmem:[%s3 + $0x140] sm:$0xff]
        %v853 = vld [vmem:[%s3 + $0x148] sm:$0xff]
        %v854 = vld [vmem:[%s3 + $0x150] sm:$0xff]
        %v855 = vld [vmem:[%s3 + $0x158] sm:$0xff]
        %v856 = vld [vmem:[%s3 + $0x160] sm:$0xff]
        %v857 = vld [vmem:[%s3 + $0x168] sm:$0xff]
        %v858 = vld [vmem:[%s3 + $0x170] sm:$0xff]
        %v859 = vld [vmem:[%s3 + $0x178] sm:$0xff]
        %v860 = vld [vmem:[%s3 + $0x180] sm:$0xff]
        %v861 = vld [vmem:[%s3 + $0x188] sm:$0xff]
        %v862 = vld [vmem:[%s3 + $0x190] sm:$0xff]
        %v863 = vld [vmem:[%s3 + $0x198] sm:$0xff]
        %v864 = vld [vmem:[%s3 + $0x1a0] sm:$0xff]
        %v865 = vld [vmem:[%s3 + $0x1a8] sm:$0xff]
        %v866 = vld [vmem:[%s3 + $0x1b0] sm:$0xff]
        %v867 = vld [vmem:[%s3 + $0x1b8] sm:$0xff]
        %v868 = vld [vmem:[%s3 + $0x1c0] sm:$0xff]
        %v869 = vld [vmem:[%s3 + $0x1c8] sm:$0xff]
        %v870 = vld [vmem:[%s3 + $0x1d0] sm:$0xff]
        %v871 = vld [vmem:[%s3 + $0x1d8] sm:$0xff]
        %v872 = vld [vmem:[%s3 + $0x1e0] sm:$0xff]
        %v873 = vld [vmem:[%s3 + $0x1e8] sm:$0xff]
        %v874 = vld [vmem:[%s3 + $0x1f0] sm:$0xff]
        %v875 = vld [vmem:[%s3 + $0x1f8] sm:$0xff]
        %v876 = vld [vmem:[%s4] sm:$0x3]
        %v878 = vlaneseq
        %v879 = vshrl.u32 %v878, 7
        %v880 = vsub.s32 0, %v879
        %v881 = vrot.slane %v876, %v880
        %v882 = vlaneseq
        %v883 = vshrl.u32 %v882, 7
        %v884 = vsub.s32 1, %v883
        %v885 = vrot.slane %v876, %v884
        %v952 = vunpack.c.l.b16 %v812
        %v953 = vunpack.c.h.b16 %v812
        %v954 = vunpack.c.l.b16 %v813
        %v955 = vunpack.c.h.b16 %v813
        %v956 = vunpack.c.l.b16 %v814
        %v957 = vunpack.c.h.b16 %v814
        %v958 = vunpack.c.l.b16 %v815
        %v959 = vunpack.c.h.b16 %v815
        %v960 = vunpack.c.l.b16 %v816
        %v961 = vunpack.c.h.b16 %v816
        %v962 = vunpack.c.l.b16 %v817
        %v963 = vunpack.c.h.b16 %v817
        %v964 = vunpack.c.l.b16 %v818
        %v965 = vunpack.c.h.b16 %v818
        %v966 = vunpack.c.l.b16 %v819
        %v967 = vunpack.c.h.b16 %v819
        %v968 = vunpack.c.l.b16 %v820
        %v969 = vunpack.c.h.b16 %v820
        %v970 = vunpack.c.l.b16 %v821
        %v971 = vunpack.c.h.b16 %v821
        %v972 = vunpack.c.l.b16 %v822
        %v973 = vunpack.c.h.b16 %v822
        %v974 = vunpack.c.l.b16 %v823
        %v975 = vunpack.c.h.b16 %v823
        %v976 = vunpack.c.l.b16 %v824
        %v977 = vunpack.c.h.b16 %v824
        %v978 = vunpack.c.l.b16 %v825
        %v979 = vunpack.c.h.b16 %v825
        %v980 = vunpack.c.l.b16 %v826
        %v981 = vunpack.c.h.b16 %v826
        %v982 = vunpack.c.l.b16 %v827
        %v983 = vunpack.c.h.b16 %v827
        %v984 = vunpack.c.l.b16 %v828
        %v985 = vunpack.c.h.b16 %v828
        %v986 = vunpack.c.l.b16 %v829
        %v987 = vunpack.c.h.b16 %v829
        %v988 = vunpack.c.l.b16 %v830
        %v989 = vunpack.c.h.b16 %v830
        %v990 = vunpack.c.l.b16 %v831
        %v991 = vunpack.c.h.b16 %v831
        %v992 = vunpack.c.l.b16 %v832
        %v993 = vunpack.c.h.b16 %v832
        %v994 = vunpack.c.l.b16 %v833
        %v995 = vunpack.c.h.b16 %v833
        %v996 = vunpack.c.l.b16 %v834
        %v997 = vunpack.c.h.b16 %v834
        %v998 = vunpack.c.l.b16 %v835
        %v999 = vunpack.c.h.b16 %v835
        %v1000 = vunpack.c.l.b16 %v836
        %v1001 = vunpack.c.h.b16 %v836
        %v1002 = vunpack.c.l.b16 %v837
        %v1003 = vunpack.c.h.b16 %v837
        %v1004 = vunpack.c.l.b16 %v838
        %v1005 = vunpack.c.h.b16 %v838
        %v1006 = vunpack.c.l.b16 %v839
        %v1007 = vunpack.c.h.b16 %v839
        %v1008 = vunpack.c.l.b16 %v840
        %v1009 = vunpack.c.h.b16 %v840
        %v1010 = vunpack.c.l.b16 %v841
        %v1011 = vunpack.c.h.b16 %v841
        %v1012 = vunpack.c.l.b16 %v842
        %v1013 = vunpack.c.h.b16 %v842
        %v1014 = vunpack.c.l.b16 %v843
        %v1015 = vunpack.c.h.b16 %v843
        %v1016 = vunpack.c.l.b16 %v844
        %v1017 = vunpack.c.h.b16 %v844
        %v1018 = vunpack.c.l.b16 %v845
        %v1019 = vunpack.c.h.b16 %v845
        %v1020 = vunpack.c.l.b16 %v846
        %v1021 = vunpack.c.h.b16 %v846
        %v1022 = vunpack.c.l.b16 %v847
        %v1023 = vunpack.c.h.b16 %v847
        %v1024 = vunpack.c.l.b16 %v848
        %v1025 = vunpack.c.h.b16 %v848
        %v1026 = vunpack.c.l.b16 %v849
        %v1027 = vunpack.c.h.b16 %v849
        %v1028 = vunpack.c.l.b16 %v850
        %v1029 = vunpack.c.h.b16 %v850
        %v1030 = vunpack.c.l.b16 %v851
        %v1031 = vunpack.c.h.b16 %v851
        %v1032 = vunpack.c.l.b16 %v852
        %v1033 = vunpack.c.h.b16 %v852
        %v1034 = vunpack.c.l.b16 %v853
        %v1035 = vunpack.c.h.b16 %v853
        %v1036 = vunpack.c.l.b16 %v854
        %v1037 = vunpack.c.h.b16 %v854
        %v1038 = vunpack.c.l.b16 %v855
        %v1039 = vunpack.c.h.b16 %v855
        %v1040 = vunpack.c.l.b16 %v856
        %v1041 = vunpack.c.h.b16 %v856
        %v1042 = vunpack.c.l.b16 %v857
        %v1043 = vunpack.c.h.b16 %v857
        %v1044 = vunpack.c.l.b16 %v858
        %v1045 = vunpack.c.h.b16 %v858
        %v1046 = vunpack.c.l.b16 %v859
        %v1047 = vunpack.c.h.b16 %v859
        %v1048 = vunpack.c.l.b16 %v860
        %v1049 = vunpack.c.h.b16 %v860
        %v1050 = vunpack.c.l.b16 %v861
        %v1051 = vunpack.c.h.b16 %v861
        %v1052 = vunpack.c.l.b16 %v862
        %v1053 = vunpack.c.h.b16 %v862
        %v1054 = vunpack.c.l.b16 %v863
        %v1055 = vunpack.c.h.b16 %v863
        %v1056 = vunpack.c.l.b16 %v864
        %v1057 = vunpack.c.h.b16 %v864
        %v1058 = vunpack.c.l.b16 %v865
        %v1059 = vunpack.c.h.b16 %v865
        %v1060 = vunpack.c.l.b16 %v866
        %v1061 = vunpack.c.h.b16 %v866
        %v1062 = vunpack.c.l.b16 %v867
        %v1063 = vunpack.c.h.b16 %v867
        %v1064 = vunpack.c.l.b16 %v868
        %v1065 = vunpack.c.h.b16 %v868
        %v1066 = vunpack.c.l.b16 %v869
        %v1067 = vunpack.c.h.b16 %v869
        %v1068 = vunpack.c.l.b16 %v870
        %v1069 = vunpack.c.h.b16 %v870
        %v1070 = vunpack.c.l.b16 %v871
        %v1071 = vunpack.c.h.b16 %v871
        %v1072 = vunpack.c.l.b16 %v872
        %v1073 = vunpack.c.h.b16 %v872
        %v1074 = vunpack.c.l.b16 %v873
        %v1075 = vunpack.c.h.b16 %v873
        %v1076 = vunpack.c.l.b16 %v874
        %v1077 = vunpack.c.h.b16 %v874
        %v1078 = vunpack.c.l.b16 %v875
        %v1079 = vunpack.c.h.b16 %v875
        %v1080 = vpack.c.b16 %v954, %v952
        %v1081 = vpack.c.b16 %v955, %v953
        %v1082 = vpack.c.b16 %v958, %v956
        %v1083 = vpack.c.b16 %v959, %v957
        %v1084 = vpack.c.b16 %v962, %v960
        %v1085 = vpack.c.b16 %v963, %v961
        %v1086 = vpack.c.b16 %v966, %v964
        %v1087 = vpack.c.b16 %v967, %v965
        %v1088 = vpack.c.b16 %v970, %v968
        %v1089 = vpack.c.b16 %v971, %v969
        %v1090 = vpack.c.b16 %v974, %v972
        %v1091 = vpack.c.b16 %v975, %v973
        %v1092 = vpack.c.b16 %v978, %v976
        %v1093 = vpack.c.b16 %v979, %v977
        %v1094 = vpack.c.b16 %v982, %v980
        %v1095 = vpack.c.b16 %v983, %v981
        %v1096 = vpack.c.b16 %v986, %v984
        %v1097 = vpack.c.b16 %v987, %v985
        %v1098 = vpack.c.b16 %v990, %v988
        %v1099 = vpack.c.b16 %v991, %v989
        %v1100 = vpack.c.b16 %v994, %v992
        %v1101 = vpack.c.b16 %v995, %v993
        %v1102 = vpack.c.b16 %v998, %v996
        %v1103 = vpack.c.b16 %v999, %v997
        %v1104 = vpack.c.b16 %v1002, %v1000
        %v1105 = vpack.c.b16 %v1003, %v1001
        %v1106 = vpack.c.b16 %v1006, %v1004
        %v1107 = vpack.c.b16 %v1007, %v1005
        %v1108 = vpack.c.b16 %v1010, %v1008
        %v1109 = vpack.c.b16 %v1011, %v1009
        %v1110 = vpack.c.b16 %v1014, %v1012
        %v1111 = vpack.c.b16 %v1015, %v1013
        %v1112 = vpack.c.b16 %v1018, %v1016
        %v1113 = vpack.c.b16 %v1019, %v1017
        %v1114 = vpack.c.b16 %v1022, %v1020
        %v1115 = vpack.c.b16 %v1023, %v1021
        %v1116 = vpack.c.b16 %v1026, %v1024
        %v1117 = vpack.c.b16 %v1027, %v1025
        %v1118 = vpack.c.b16 %v1030, %v1028
        %v1119 = vpack.c.b16 %v1031, %v1029
        %v1120 = vpack.c.b16 %v1034, %v1032
        %v1121 = vpack.c.b16 %v1035, %v1033
        %v1122 = vpack.c.b16 %v1038, %v1036
        %v1123 = vpack.c.b16 %v1039, %v1037
        %v1124 = vpack.c.b16 %v1042, %v1040
        %v1125 = vpack.c.b16 %v1043, %v1041
        %v1126 = vpack.c.b16 %v1046, %v1044
        %v1127 = vpack.c.b16 %v1047, %v1045
        %v1128 = vpack.c.b16 %v1050, %v1048
        %v1129 = vpack.c.b16 %v1051, %v1049
        %v1130 = vpack.c.b16 %v1054, %v1052
        %v1131 = vpack.c.b16 %v1055, %v1053
        %v1132 = vpack.c.b16 %v1058, %v1056
        %v1133 = vpack.c.b16 %v1059, %v1057
        %v1134 = vpack.c.b16 %v1062, %v1060
        %v1135 = vpack.c.b16 %v1063, %v1061
        %v1136 = vpack.c.b16 %v1066, %v1064
        %v1137 = vpack.c.b16 %v1067, %v1065
        %v1138 = vpack.c.b16 %v1070, %v1068
        %v1139 = vpack.c.b16 %v1071, %v1069
        %v1140 = vpack.c.b16 %v1074, %v1072
        %v1141 = vpack.c.b16 %v1075, %v1073
        %v1142 = vpack.c.b16 %v1078, %v1076
        %v1143 = vpack.c.b16 %v1079, %v1077
        %1208 = vmatprep.subr.bf16.mxu0 %v1081
        %1209 = vmatpush1.bf16.msra.mxu0 %v1080
        %1210 = vmatprep.subr.bf16.mxu0 %v1083
        %1211 = vmatpush1.bf16.msra.mxu0 %v1082
        %1212 = vmatprep.subr.bf16.mxu0 %v1085
        %1213 = vmatpush1.bf16.msra.mxu0 %v1084
        %1214 = vmatprep.subr.bf16.mxu0 %v1087
        %1215 = vmatpush1.bf16.msra.mxu0 %v1086
        %1216 = vmatprep.subr.bf16.mxu0 %v1089
        %1217 = vmatpush1.bf16.msra.mxu0 %v1088
        %1218 = vmatprep.subr.bf16.mxu0 %v1091
        %1219 = vmatpush1.bf16.msra.mxu0 %v1090
        %1220 = vmatprep.subr.bf16.mxu0 %v1093
        %1221 = vmatpush1.bf16.msra.mxu0 %v1092
        %1222 = vmatprep.subr.bf16.mxu0 %v1095
        %1223 = vmatpush1.bf16.msra.mxu0 %v1094
        %1224 = vmatprep.subr.bf16.mxu0 %v1097
        %1225 = vmatpush1.bf16.msra.mxu0 %v1096
        %1226 = vmatprep.subr.bf16.mxu0 %v1099
        %1227 = vmatpush1.bf16.msra.mxu0 %v1098
        %1228 = vmatprep.subr.bf16.mxu0 %v1101
        %1229 = vmatpush1.bf16.msra.mxu0 %v1100
        %1230 = vmatprep.subr.bf16.mxu0 %v1103
        %1231 = vmatpush1.bf16.msra.mxu0 %v1102
        %1232 = vmatprep.subr.bf16.mxu0 %v1105
        %1233 = vmatpush1.bf16.msra.mxu0 %v1104
        %1234 = vmatprep.subr.bf16.mxu0 %v1107
        %1235 = vmatpush1.bf16.msra.mxu0 %v1106
        %1236 = vmatprep.subr.bf16.mxu0 %v1109
        %1237 = vmatpush1.bf16.msra.mxu0 %v1108
        %1238 = vmatprep.subr.bf16.mxu0 %v1111
        %1239 = vmatpush1.bf16.msra.mxu0 %v1110
        %1240 = vmatprep.mubr.bf16.mxu0 %v805
        %1241 = vmatmul.mubr.bf16.gmra.mrb[0].mxu0 %v804
        %v1242 = vpop.f32.mrb[0].mxu0
        %v1243 = vadd.f32 %v881, %v1242
        %v1244 = vpop.f32.mrb[0].mxu0
        %v1245 = vadd.f32 %v885, %v1244
        %v1246 = vpop.f32.mrb[0].mxu0
        %v1247 = vadd.f32 %v881, %v1246
        %v1248 = vpop.f32.mrb[0].mxu0
        %v1249 = vadd.f32 %v885, %v1248
        %1250 = vmatprep.mubr.bf16.mxu0 %v807
        %1251 = vmatmul.mubr.bf16.gmra.mrb[0].mxu0 %v806
        %v1252 = vpop.f32.mrb[0].mxu0
        %v1253 = vadd.f32 %v881, %v1252
        %v1254 = vpop.f32.mrb[0].mxu0
        %v1255 = vadd.f32 %v885, %v1254
        %v1256 = vpop.f32.mrb[0].mxu0
        %v1257 = vadd.f32 %v881, %v1256
        %v1258 = vpop.f32.mrb[0].mxu0
        %v1259 = vadd.f32 %v885, %v1258
        %1260 = vdwg.mxu0
        %1261 = vmatprep.subr.bf16.mxu0 %v1113
        %1262 = vmatpush1.bf16.msra.mxu0 %v1112
        %1263 = vmatprep.subr.bf16.mxu0 %v1115
        %1264 = vmatpush1.bf16.msra.mxu0 %v1114
        %1265 = vmatprep.subr.bf16.mxu0 %v1117
        %1266 = vmatpush1.bf16.msra.mxu0 %v1116
        %1267 = vmatprep.subr.bf16.mxu0 %v1119
        %1268 = vmatpush1.bf16.msra.mxu0 %v1118
        %1269 = vmatprep.subr.bf16.mxu0 %v1121
        %1270 = vmatpush1.bf16.msra.mxu0 %v1120
        %1271 = vmatprep.subr.bf16.mxu0 %v1123
        %1272 = vmatpush1.bf16.msra.mxu0 %v1122
        %1273 = vmatprep.subr.bf16.mxu0 %v1125
        %1274 = vmatpush1.bf16.msra.mxu0 %v1124
        %1275 = vmatprep.subr.bf16.mxu0 %v1127
        %1276 = vmatpush1.bf16.msra.mxu0 %v1126
        %1277 = vmatprep.subr.bf16.mxu0 %v1129
        %1278 = vmatpush1.bf16.msra.mxu0 %v1128
        %1279 = vmatprep.subr.bf16.mxu0 %v1131
        %1280 = vmatpush1.bf16.msra.mxu0 %v1130
        %1281 = vmatprep.subr.bf16.mxu0 %v1133
        %1282 = vmatpush1.bf16.msra.mxu0 %v1132
        %1283 = vmatprep.subr.bf16.mxu0 %v1135
        %1284 = vmatpush1.bf16.msra.mxu0 %v1134
        %1285 = vmatprep.subr.bf16.mxu0 %v1137
        %1286 = vmatpush1.bf16.msra.mxu0 %v1136
        %1287 = vmatprep.subr.bf16.mxu0 %v1139
        %1288 = vmatpush1.bf16.msra.mxu0 %v1138
        %1289 = vmatprep.subr.bf16.mxu0 %v1141
        %1290 = vmatpush1.bf16.msra.mxu0 %v1140
        %1291 = vmatprep.subr.bf16.mxu0 %v1143
        %1292 = vmatpush1.bf16.msra.mxu0 %v1142
        %1293 = vmatprep.mubr.bf16.mxu0 %v809
        %1294 = vmatmul.mubr.bf16.gmra.mrb[0].mxu0 %v808
        %v1295 = vpop.f32.mrb[0].mxu0
        %v1296 = vadd.f32 %v1243, %v1295
        %v1297 = vpop.f32.mrb[0].mxu0
        %v1298 = vadd.f32 %v1245, %v1297
        %v1299 = vpop.f32.mrb[0].mxu0
        %v1300 = vadd.f32 %v1247, %v1299
        %v1301 = vpop.f32.mrb[0].mxu0
        %v1302 = vadd.f32 %v1249, %v1301
        %1303 = vmatprep.mubr.bf16.mxu0 %v811
        %1304 = vmatmul.mubr.bf16.gmra.mrb[0].mxu0 %v810
        %v1305 = vpop.f32.mrb[0].mxu0
        %v1306 = vadd.f32 %v1253, %v1305
        %v1307 = vpop.f32.mrb[0].mxu0
        %v1308 = vadd.f32 %v1255, %v1307
        %v1309 = vpop.f32.mrb[0].mxu0
        %v1310 = vadd.f32 %v1257, %v1309
        %v1311 = vpop.f32.mrb[0].mxu0
        %v1312 = vadd.f32 %v1259, %v1311
        %1313 = vdwg.mxu0
        %v1314 = vmax.f32 %v1296, 0.0
        %v1315 = vmax.f32 %v1298, 0.0
        %v1316 = vmax.f32 %v1300, 0.0
        %v1317 = vmax.f32 %v1302, 0.0
        %v1318 = vmax.f32 %v1306, 0.0
        %v1319 = vmax.f32 %v1308, 0.0
        %v1320 = vmax.f32 %v1310, 0.0
        %v1321 = vmax.f32 %v1312, 0.0
        %v1322 = vrot.slane %v1314, 4
        %v1323 = vadd.f32 %v1314, %v1322
        %v1324 = vrot.slane %v1323, 2
        %v1325 = vadd.f32 %v1323, %v1324
        %v1326 = vrot.slane %v1325, 1
        %v1327 = vadd.f32 %v1325, %v1326
        %v1328 = vrot.slane %v1315, 4
        %v1329 = vadd.f32 %v1315, %v1328
        %v1330 = vrot.slane %v1329, 2
        %v1331 = vadd.f32 %v1329, %v1330
        %v1332 = vrot.slane %v1331, 1
        %v1333 = vadd.f32 %v1331, %v1332
        %v1334 = vrot.slane %v1316, 4
        %v1335 = vadd.f32 %v1316, %v1334
        %v1336 = vrot.slane %v1335, 2
        %v1337 = vadd.f32 %v1335, %v1336
        %v1338 = vrot.slane %v1337, 1
        %v1339 = vadd.f32 %v1337, %v1338
        %v1340 = vrot.slane %v1317, 4
        %v1341 = vadd.f32 %v1317, %v1340
        %v1342 = vrot.slane %v1341, 2
        %v1343 = vadd.f32 %v1341, %v1342
        %v1344 = vrot.slane %v1343, 1
        %v1345 = vadd.f32 %v1343, %v1344
        %v1346 = vrot.slane %v1318, 4
        %v1347 = vadd.f32 %v1318, %v1346
        %v1348 = vrot.slane %v1347, 2
        %v1349 = vadd.f32 %v1347, %v1348
        %v1350 = vrot.slane %v1349, 1
        %v1351 = vadd.f32 %v1349, %v1350
        %v1352 = vrot.slane %v1319, 4
        %v1353 = vadd.f32 %v1319, %v1352
        %v1354 = vrot.slane %v1353, 2
        %v1355 = vadd.f32 %v1353, %v1354
        %v1356 = vrot.slane %v1355, 1
        %v1357 = vadd.f32 %v1355, %v1356
        %v1358 = vrot.slane %v1320, 4
        %v1359 = vadd.f32 %v1320, %v1358
        %v1360 = vrot.slane %v1359, 2
        %v1361 = vadd.f32 %v1359, %v1360
        %v1362 = vrot.slane %v1361, 1
        %v1363 = vadd.f32 %v1361, %v1362
        %v1364 = vrot.slane %v1321, 4
        %v1365 = vadd.f32 %v1321, %v1364
        %v1366 = vrot.slane %v1365, 2
        %v1367 = vadd.f32 %v1365, %v1366
        %v1368 = vrot.slane %v1367, 1
        %v1369 = vadd.f32 %v1367, %v1368
        %v1370 = vld [vmem:[%s5] sm:$0xff]
        %v1371 = vld [vmem:[%s5 + $0x8] sm:$0xff]
        %v1372 = vld [vmem:[%s5 + $0x10] sm:$0xff]
        %v1373 = vld [vmem:[%s5 + $0x18] sm:$0xff]
        %v1374 = vld [vmem:[%s5 + $0x20] sm:$0xff]
        %v1375 = vld [vmem:[%s5 + $0x28] sm:$0xff]
        %v1376 = vld [vmem:[%s5 + $0x30] sm:$0xff]
        %v1377 = vld [vmem:[%s5 + $0x38] sm:$0xff]
        %v1378 = vld [vmem:[%s5 + $0x40] sm:$0xff]
        %v1379 = vld [vmem:[%s5 + $0x48] sm:$0xff]
        %v1380 = vld [vmem:[%s5 + $0x50] sm:$0xff]
        %v1381 = vld [vmem:[%s5 + $0x58] sm:$0xff]
        %v1382 = vld [vmem:[%s5 + $0x60] sm:$0xff]
        %v1383 = vld [vmem:[%s5 + $0x68] sm:$0xff]
        %v1384 = vld [vmem:[%s5 + $0x70] sm:$0xff]
        %v1385 = vld [vmem:[%s5 + $0x78] sm:$0xff]
        %v1386 = vld [vmem:[%s5 + $0x80] sm:$0xff]
        %v1387 = vld [vmem:[%s5 + $0x88] sm:$0xff]
        %v1388 = vld [vmem:[%s5 + $0x90] sm:$0xff]
        %v1389 = vld [vmem:[%s5 + $0x98] sm:$0xff]
        %v1390 = vld [vmem:[%s5 + $0xa0] sm:$0xff]
        %v1391 = vld [vmem:[%s5 + $0xa8] sm:$0xff]
        %v1392 = vld [vmem:[%s5 + $0xb0] sm:$0xff]
        %v1393 = vld [vmem:[%s5 + $0xb8] sm:$0xff]
        %v1394 = vld [vmem:[%s5 + $0xc0] sm:$0xff]
        %v1395 = vld [vmem:[%s5 + $0xc8] sm:$0xff]
        %v1396 = vld [vmem:[%s5 + $0xd0] sm:$0xff]
        %v1397 = vld [vmem:[%s5 + $0xd8] sm:$0xff]
        %v1398 = vld [vmem:[%s5 + $0xe0] sm:$0xff]
        %v1399 = vld [vmem:[%s5 + $0xe8] sm:$0xff]
        %v1400 = vld [vmem:[%s5 + $0xf0] sm:$0xff]
        %v1401 = vld [vmem:[%s5 + $0xf8] sm:$0xff]
        %vm1410 = vcmask 1041409
        %v1411 = vsel %vm1410, %v1339, %v1327
        %vm1412 = vcmask 1042434
        %v1413 = vsel %vm1412, %v1351, %v1411
        %vm1414 = vcmask 1043459
        %v1415 = vsel %vm1414, %v1363, %v1413
        %v1416 = vsel %vm1410, %v1345, %v1333
        %v1417 = vsel %vm1412, %v1357, %v1416
        %v1418 = vsel %vm1414, %v1369, %v1417
        %1421 = vmatprep.subr.mxu0 0.0
        %1422 = vmatpush1.msra.mxu0 %v1370
        %1423 = vmatprep.subr.mxu0 0.0
        %1424 = vmatpush1.msra.mxu0 %v1371
        %1425 = vmatprep.subr.mxu0 0.0
        %1426 = vmatpush1.msra.mxu0 %v1372
        %1427 = vmatprep.subr.mxu0 0.0
        %1428 = vmatpush1.msra.mxu0 %v1373
        %1429 = vmatprep.subr.mxu0 0.0
        %1430 = vmatpush1.msra.mxu0 %v1374
        %1431 = vmatprep.subr.mxu0 0.0
        %1432 = vmatpush1.msra.mxu0 %v1375
        %1433 = vmatprep.subr.mxu0 0.0
        %1434 = vmatpush1.msra.mxu0 %v1376
        %1435 = vmatprep.subr.mxu0 0.0
        %1436 = vmatpush1.msra.mxu0 %v1377
        %1437 = vmatprep.subr.mxu0 0.0
        %1438 = vmatpush1.msra.mxu0 %v1378
        %1439 = vmatprep.subr.mxu0 0.0
        %1440 = vmatpush1.msra.mxu0 %v1379
        %1441 = vmatprep.subr.mxu0 0.0
        %1442 = vmatpush1.msra.mxu0 %v1380
        %1443 = vmatprep.subr.mxu0 0.0
        %1444 = vmatpush1.msra.mxu0 %v1381
        %1445 = vmatprep.subr.mxu0 0.0
        %1446 = vmatpush1.msra.mxu0 %v1382
        %1447 = vmatprep.subr.mxu0 0.0
        %1448 = vmatpush1.msra.mxu0 %v1383
        %1449 = vmatprep.subr.mxu0 0.0
        %1450 = vmatpush1.msra.mxu0 %v1384
        %1451 = vmatprep.subr.mxu0 0.0
        %1452 = vmatpush1.msra.mxu0 %v1385
        %1453 = vmatprep.subr.mxu0 0.0
        %1454 = vmatpush1.msra.mxu0 %v1386
        %1455 = vmatprep.subr.mxu0 0.0
        %1456 = vmatpush1.msra.mxu0 %v1387
        %1457 = vmatprep.subr.mxu0 0.0
        %1458 = vmatpush1.msra.mxu0 %v1388
        %1459 = vmatprep.subr.mxu0 0.0
        %1460 = vmatpush1.msra.mxu0 %v1389
        %1461 = vmatprep.subr.mxu0 0.0
        %1462 = vmatpush1.msra.mxu0 %v1390
        %1463 = vmatprep.subr.mxu0 0.0
        %1464 = vmatpush1.msra.mxu0 %v1391
        %1465 = vmatprep.subr.mxu0 0.0
        %1466 = vmatpush1.msra.mxu0 %v1392
        %1467 = vmatprep.subr.mxu0 0.0
        %1468 = vmatpush1.msra.mxu0 %v1393
        %1469 = vmatprep.subr.mxu0 0.0
        %1470 = vmatpush1.msra.mxu0 %v1394
        %1471 = vmatprep.subr.mxu0 0.0
        %1472 = vmatpush1.msra.mxu0 %v1395
        %1473 = vmatprep.subr.mxu0 0.0
        %1474 = vmatpush1.msra.mxu0 %v1396
        %1475 = vmatprep.subr.mxu0 0.0
        %1476 = vmatpush1.msra.mxu0 %v1397
        %1477 = vmatprep.subr.mxu0 0.0
        %1478 = vmatpush1.msra.mxu0 %v1398
        %1479 = vmatprep.subr.mxu0 0.0
        %1480 = vmatpush1.msra.mxu0 %v1399
        %1481 = vmatprep.subr.mxu0 0.0
        %1482 = vmatpush1.msra.mxu0 %v1400
        %1483 = vmatprep.subr.mxu0 0.0
        %1484 = vmatpush1.msra.mxu0 %v1401
        %1485 = vmatprep.mubr.f32.mxu0 %v1418
        %1486 = vmatmul.mubr.f32.gmra.mrb[0].mxu0 %v1415
        %v1487 = vpop.f32.mrb[0].mxu0
        %v1488 = vadd.f32 0.0, %v1487
        %v1489 = vpop.f32.mrb[0].mxu0
        %1490 = vdwg.mxu0
        %vm1491 = vcmask 257024
        %1492 = vst.msk [vmem:[%s245] sm:$0xf] %vm1491, %v1488
        %s1493 = sand.u32 %s159, 1
        %s1494 = scalar_lea.sflag [#allocation3], %s1493
        %s1495 = sand.u32 %s159, 1
        %s1496 = smul.addr %s1495, 4
        %s1497 = scalar_lea.vmem [#allocation2], %s1496
        // Predicated region
        $region45: #{facenet_forward.1} parent=43 // pred_check
          %p1498 = pneg %p169
        $region46: #{facenet_forward.1} parent=43 // pred_check_branch
          %1500 = sbr.rel (%p1498) target = $region48
        $region47: #{facenet_forward.1} parent=43 // pred_region
          %s1502 = ssub.s32 64, 64
          %1503 = vsyncadd %s1494, %s1502
          %s1504 = smul.addr %s20, 64
          %s1505 = scalar_lea.hbm %s6, %s1504
          %s1507 = sshll.u32 %s1497, 4
          %s1508 = int_to_ptr.vmem [resolvable:$true] %s1507
          %1510 = dma.vmem_to_hbm [thread:$0]  %s1508, 64, %s1505, %s1494
        $region48: #{facenet_forward.1} parent=43 // pred_fallthru
          _
      $region44: #{facenet_forward.1} parent=5 // pred_fallthru
        _
      %p1511 = scmp.le.s32.totalorder 2, %s15
      // Predicated region
      $region49: #{facenet_forward.1} parent=5 // pred_check
        %p1512 = pneg %p1511
      $region50: #{facenet_forward.1} parent=5 // pred_check_branch
        %1514 = sbr.rel (%p1512) target = $region52
      $region51: #{facenet_forward.1} parent=5 // pred_region
        %s1515 = ssub.s32 %s15, 2
        // Predicated region
        $region53: #{facenet_forward.1} parent=51 // pred_check
          %p1516 = pneg %p175
        $region54: #{facenet_forward.1} parent=51 // pred_check_branch
          %1518 = sbr.rel (%p1516) target = $region56
        $region55: #{facenet_forward.1} parent=51 // pred_region
          %s1519 = sand.u32 %s160, 1
          %s1520 = scalar_lea.sflag [#allocation3], %s1519
          %s1521 = sand.u32 %s160, 1
          %s1522 = smul.addr %s1521, 4
          %s1523 = scalar_lea.vmem [#allocation2], %s1522
          %1524 = dma.done %s1520, 64
        $region56: #{facenet_forward.1} parent=51 // pred_fallthru
          _
      $region52: #{facenet_forward.1} parent=5 // pred_fallthru
        _
    $region6: #{facenet_forward.1} parent=1 // loop_footer
      %s19 = sadd.s32 1, %s15
    $region7: #{facenet_forward.1} parent=1 // loop_footer_branch
      %14 = sbr.rel target = $region3
    $region8: #{facenet_forward.1} parent=1 // loop_exit
      _
    %1525 = vsyncpa [#allocation3], 1
    %s1526 = scalar_lea.sflag [#allocation3], 1
    %1527 = vsyncpa %s1526, 1

</llo_original>
